<compile_context>
chip_gen: v6e
topology: v6e:2x2x1
jax: 0.10.0
libtpu: 0.0.40
codegen_flags: <defaults>
</compile_context>

<pallas_src>
import functools

import jax
import jax.numpy as jnp
from jax import lax
from jax.experimental import pallas as pl
from jax.experimental.pallas import tpu as pltpu


def _resblock_kernel(x_ref, w1_ref, b1_ref, w2_ref, b2_ref, o_ref, *, W):
    """One lane-packed batch chunk of TB images.

    x_ref : (1, C, H, L)   lane-packed input block, L = TB * W (= 128)
    w*_ref: (C*C*9,) SMEM  flattened OIHW conv weights
    b*_ref: (C,)     SMEM  conv biases
    o_ref : (1, C, H, L)   lane-packed output block (unmasked 128-lane stores)
    """
    _, C, H, L = x_ref.shape
    f32 = jnp.float32

    # Static boundary masks (hoisted by the compiler; booleans live as vmasks).
    wloc = lax.broadcasted_iota(jnp.int32, (H, L), 1) % W
    keep_l = wloc != 0            # dx=0 tap invalid at local col 0 of each image
    keep_r = wloc != (W - 1)      # dx=2 tap invalid at local col W-1
    rloc = lax.broadcasted_iota(jnp.int32, (H, L), 0)
    keep_t = rloc != 0            # dy=0 tap invalid at row 0
    keep_b = rloc != (H - 1)      # dy=2 tap invalid at row H-1

    def conv3x3(srcs, w_ref, b_ref):
        # srcs: list of C (H, L) f32 planes held in vregs.
        # Returns C pre-activation planes (H, L), f32.
        accs = [jnp.full((H, L), b_ref[co], f32) for co in range(C)]
        for ci in range(C):
            base = srcs[ci]
            # dy taps: sublane rolls (XLU) + 1-row boundary masks.
            row_planes = (
                jnp.where(keep_t, pltpu.roll(base, 1, 0), 0.0),      # dy = 0
                base,                                                # dy = 1
                jnp.where(keep_b, pltpu.roll(base, H - 1, 0), 0.0),  # dy = 2
            )
            for dy in range(3):
                p = row_planes[dy]
                # dx taps: lane rolls (XLU) + per-image column masks.
                planes = (
                    jnp.where(keep_l, pltpu.roll(p, 1, 1), 0.0),      # dx = 0
                    p,                                                # dx = 1
                    jnp.where(keep_r, pltpu.roll(p, L - 1, 1), 0.0),  # dx = 2
                )
                for dx in range(3):
                    plane = planes[dx]
                    for co in range(C):
                        widx = ((co * C + ci) * 3 + dy) * 3 + dx
                        accs[co] = accs[co] + w_ref[widx] * plane
        return accs

    # Full-vreg loads of the lane-dense input (also reused for the residual).
    x_planes = [x_ref[0, c, :, :].astype(f32) for c in range(C)]

    # conv1 + relu -> kept entirely in registers (no VMEM scratch round trip).
    mid = [jnp.maximum(a, 0.0) for a in conv3x3(x_planes, w1_ref, b1_ref)]

    # conv2 + relu + residual -> lane-dense (128-wide) unmasked output stores.
    acc2 = conv3x3(mid, w2_ref, b2_ref)
    for co in range(C):
        o_ref[0, co, :, :] = (jnp.maximum(acc2[co], 0.0)
                              + x_planes[co]).astype(o_ref.dtype)


def simple_residual_block(x, w1, b1, w2, b2, images_per_block=None):
    """x: (N, 3, H, W) float32; w*: (3, 3, 3, 3) OIHW; b*: (3,).

    TB = images_per_block images are packed along the 128-lane axis per grid
    step (default fills the lane axis: TB*W = 128). Keep TB <= 16 so the fully
    unrolled conv stays well under the 64-vreg file; keep NB = N/TB even so
    both v7x TensorCores get work.
    """
    N, C, H, W = x.shape
    TB = images_per_block if images_per_block is not None else max(1, 128 // W)
    NB = pl.cdiv(N, TB)
    Np = NB * TB
    if Np != N:  # pad batch up to a multiple of TB with zero images
        x = jnp.pad(x, ((0, Np - N), (0, 0), (0, 0), (0, 0)))
    L = TB * W

    # Lane-dense pre-pack in the wrapper (mirror of the output unpack):
    # packed[b, c, h, n*W + w] = x[b*TB + n, c, h, w]
    x_packed = (x.reshape(NB, TB, C, H, W)
                 .transpose(0, 2, 3, 1, 4)
                 .reshape(NB, C, H, L))

    flops = 2 * (2 * Np * C * C * 9 * H * W)     # two 3x3 convs, mul+add
    bytes_accessed = 2 * Np * C * H * W * 4      # read x + write out (f32)

    smem = pl.BlockSpec(memory_space=pltpu.MemorySpace.SMEM)
    out_packed = pl.pallas_call(
        functools.partial(_resblock_kernel, W=W),
        out_shape=jax.ShapeDtypeStruct((NB, C, H, L), x.dtype),
        grid=(NB,),
        in_specs=[
            pl.BlockSpec((1, C, H, L), lambda b: (b, 0, 0, 0)),
            smem,  # w1 flat
            smem,  # b1
            smem,  # w2 flat
            smem,  # b2
        ],
        out_specs=pl.BlockSpec((1, C, H, L), lambda b: (b, 0, 0, 0)),
        compiler_params=pltpu.CompilerParams(
            dimension_semantics=("parallel",)),
        cost_estimate=pl.CostEstimate(flops=flops, transcendentals=0,
                                      bytes_accessed=bytes_accessed),
    )(x_packed, w1.reshape(-1), b1, w2.reshape(-1), b2)

    # Un-pack lanes: (NB, C, H, TB*W) -> (N, C, H, W).
    out = (out_packed.reshape(NB, C, H, TB, W)
           .transpose(0, 3, 1, 2, 4)
           .reshape(Np, C, H, W))
    return out[:N]


def _reference(x, w1, b1, w2, b2):
    dn = lax.conv_dimension_numbers(x.shape, w1.shape, ("NCHW", "OIHW", "NCHW"))
    h = lax.conv_general_dilated(x, w1, (1, 1), ((1, 1), (1, 1)),
                                 dimension_numbers=dn,
                                 precision=lax.Precision.HIGHEST)
    h = jnp.maximum(h + b1[None, :, None, None], 0.0)
    h = lax.conv_general_dilated(h, w2, (1, 1), ((1, 1), (1, 1)),
                                 dimension_numbers=dn,
                                 precision=lax.Precision.HIGHEST)
    # relu(conv2 + b2) then residual add -> matches relu2(out) + x in the module.
    return jnp.maximum(h + b2[None, :, None, None], 0.0) + x


if __name__ == "__main__":
    key = jax.random.PRNGKey(0)
    k_x, k_w1, k_b1, k_w2, k_b2 = jax.random.split(key, 5)

    # Channels fixed to 3 by the module; N=16 -> two lane-packed chunks of 8
    # (NB=2, so both v7x TensorCores get a grid step).
    N, C, H, W = 16, 3, 16, 16
    x = jax.random.normal(k_x, (N, C, H, W), jnp.float32)
    w1 = jax.random.normal(k_w1, (C, C, 3, 3), jnp.float32) * 0.1
    b1 = jax.random.normal(k_b1, (C,), jnp.float32) * 0.1
    w2 = jax.random.normal(k_w2, (C, C, 3, 3), jnp.float32) * 0.1
    b2 = jax.random.normal(k_b2, (C,), jnp.float32) * 0.1

    out = jax.block_until_ready(simple_residual_block(x, w1, b1, w2, b2))

    ref = _reference(x, w1, b1, w2, b2)
    assert out.shape == ref.shape == (N, C, H, W)
    assert jnp.allclose(out, ref, rtol=1e-4, atol=1e-4), "mismatch vs reference"

    print("KERNEL_OK")
</pallas_src>

<mosaic_0001>
module attributes {stable_mosaic.version = 11 : i64} {
  func.func @_resblock_kernel(%arg0: i32, %arg1: memref<1x3x16x128xf32, #tpu.memory_space<vmem>>, %arg2: memref<81xf32, #tpu.memory_space<smem>>, %arg3: memref<3xf32, #tpu.memory_space<smem>>, %arg4: memref<81xf32, #tpu.memory_space<smem>>, %arg5: memref<3xf32, #tpu.memory_space<smem>>, %arg6: memref<1x3x16x128xf32, #tpu.memory_space<vmem>>) attributes {dimension_semantics = [#tpu.dimension_semantics<parallel>], iteration_bounds = array<i64: 2>, scalar_prefetch = 0 : i64, scratch_operands = 0 : i64, tpu.core_type = #tpu.core_type<tc>, window_params = [{transform_indices = @transform_0, window_bounds = array<i64: 1, 3, 16, 128>}, {transform_indices = @transform_1, window_bounds = array<i64: 81>}, {transform_indices = @transform_2, window_bounds = array<i64: 3>}, {transform_indices = @transform_3, window_bounds = array<i64: 81>}, {transform_indices = @transform_4, window_bounds = array<i64: 3>}, {transform_indices = @transform_5, window_bounds = array<i64: 1, 3, 16, 128>}]} {
    %0 = tpu.iota {dimensions = array<i32: 1>} : vector<16x128xi32>
    %c16_i32 = arith.constant 16 : i32
    %c0_i32 = arith.constant 0 : i32
    %1 = arith.cmpi eq, %c16_i32, %c0_i32 : i32
    %c1_i32 = arith.constant 1 : i32
    %2 = arith.select %1, %c1_i32, %c16_i32 : i32
    %3 = vector.broadcast %2 : i32 to vector<16x128xi32>
    %4 = arith.remsi %0, %3 : vector<16x128xi32>
    %c0_i32_0 = arith.constant 0 : i32
    %5 = vector.broadcast %c0_i32_0 : i32 to vector<16x128xi32>
    %6 = arith.cmpi ne, %4, %5 : vector<16x128xi32>
    %c0_i32_1 = arith.constant 0 : i32
    %7 = vector.broadcast %c0_i32_1 : i32 to vector<16x128xi32>
    %8 = arith.cmpi slt, %4, %7 : vector<16x128xi32>
    %c0_i32_2 = arith.constant 0 : i32
    %9 = arith.cmpi slt, %2, %c0_i32_2 : i32
    %10 = vector.broadcast %9 : i1 to vector<16x128xi1>
    %11 = vector.broadcast %10 : vector<16x128xi1> to vector<16x128xi1>
    %12 = arith.xori %8, %11 : vector<16x128xi1>
    %13 = arith.andi %12, %6 : vector<16x128xi1>
    %14 = vector.broadcast %2 : i32 to vector<16x128xi32>
    %15 = arith.addi %4, %14 : vector<16x128xi32>
    %16 = arith.select %13, %15, %4 : vector<16x128xi1>, vector<16x128xi32>
    %c0_i32_3 = arith.constant 0 : i32
    %17 = vector.broadcast %c0_i32_3 : i32 to vector<16x128xi32>
    %18 = arith.cmpi ne, %16, %17 : vector<16x128xi32>
    %c15_i32 = arith.constant 15 : i32
    %19 = vector.broadcast %c15_i32 : i32 to vector<16x128xi32>
    %20 = arith.cmpi ne, %16, %19 : vector<16x128xi32>
    %21 = tpu.iota {dimensions = array<i32: 0>} : vector<16x128xi32>
    %c0_i32_4 = arith.constant 0 : i32
    %22 = vector.broadcast %c0_i32_4 : i32 to vector<16x128xi32>
    %23 = arith.cmpi ne, %21, %22 : vector<16x128xi32>
    %c15_i32_5 = arith.constant 15 : i32
    %24 = vector.broadcast %c15_i32_5 : i32 to vector<16x128xi32>
    %25 = arith.cmpi ne, %21, %24 : vector<16x128xi32>
    %c0 = arith.constant 0 : index
    %c0_6 = arith.constant 0 : index
    %c0_7 = arith.constant 0 : index
    %c0_8 = arith.constant 0 : index
    %26 = vector.load %arg1[%c0, %c0_6, %c0_7, %c0_8] : memref<1x3x16x128xf32, #tpu.memory_space<vmem>>, vector<1x1x16x128xf32>
    %27 = vector.shape_cast %26 : vector<1x1x16x128xf32> to vector<16x128xf32>
    %c0_9 = arith.constant 0 : index
    %c1 = arith.constant 1 : index
    %c0_10 = arith.constant 0 : index
    %c0_11 = arith.constant 0 : index
    %28 = vector.load %arg1[%c0_9, %c1, %c0_10, %c0_11] : memref<1x3x16x128xf32, #tpu.memory_space<vmem>>, vector<1x1x16x128xf32>
    %29 = vector.shape_cast %28 : vector<1x1x16x128xf32> to vector<16x128xf32>
    %c0_12 = arith.constant 0 : index
    %c2 = arith.constant 2 : index
    %c0_13 = arith.constant 0 : index
    %c0_14 = arith.constant 0 : index
    %30 = vector.load %arg1[%c0_12, %c2, %c0_13, %c0_14] : memref<1x3x16x128xf32, #tpu.memory_space<vmem>>, vector<1x1x16x128xf32>
    %31 = vector.shape_cast %30 : vector<1x1x16x128xf32> to vector<16x128xf32>
    %c0_15 = arith.constant 0 : index
    %32 = memref.load %arg3[%c0_15] : memref<3xf32, #tpu.memory_space<smem>>
    %33 = vector.broadcast %32 : f32 to vector<16x128xf32>
    %c1_16 = arith.constant 1 : index
    %34 = memref.load %arg3[%c1_16] : memref<3xf32, #tpu.memory_space<smem>>
    %35 = vector.broadcast %34 : f32 to vector<16x128xf32>
    %c2_17 = arith.constant 2 : index
    %36 = memref.load %arg3[%c2_17] : memref<3xf32, #tpu.memory_space<smem>>
    %37 = vector.broadcast %36 : f32 to vector<16x128xf32>
    %c1_i32_18 = arith.constant 1 : i32
    %38 = tpu.dynamic_rotate %27 by %c1_i32_18 dim 0 : vector<16x128xf32>, i32 -> vector<16x128xf32>
    %cst = arith.constant 0.000000e+00 : f32
    %39 = vector.broadcast %cst : f32 to vector<16x128xf32>
    %40 = arith.select %23, %38, %39 : vector<16x128xi1>, vector<16x128xf32>
    %c15_i32_19 = arith.constant 15 : i32
    %41 = tpu.dynamic_rotate %27 by %c15_i32_19 dim 0 : vector<16x128xf32>, i32 -> vector<16x128xf32>
    %cst_20 = arith.constant 0.000000e+00 : f32
    %42 = vector.broadcast %cst_20 : f32 to vector<16x128xf32>
    %43 = arith.select %25, %41, %42 : vector<16x128xi1>, vector<16x128xf32>
    %c1_i32_21 = arith.constant 1 : i32
    %44 = tpu.dynamic_rotate %40 by %c1_i32_21 dim 1 : vector<16x128xf32>, i32 -> vector<16x128xf32>
    %cst_22 = arith.constant 0.000000e+00 : f32
    %45 = vector.broadcast %cst_22 : f32 to vector<16x128xf32>
    %46 = arith.select %18, %44, %45 : vector<16x128xi1>, vector<16x128xf32>
    %c127_i32 = arith.constant 127 : i32
    %47 = tpu.dynamic_rotate %40 by %c127_i32 dim 1 : vector<16x128xf32>, i32 -> vector<16x128xf32>
    %cst_23 = arith.constant 0.000000e+00 : f32
    %48 = vector.broadcast %cst_23 : f32 to vector<16x128xf32>
    %49 = arith.select %20, %47, %48 : vector<16x128xi1>, vector<16x128xf32>
    %c0_24 = arith.constant 0 : index
    %50 = memref.load %arg2[%c0_24] : memref<81xf32, #tpu.memory_space<smem>>
    %51 = vector.broadcast %50 : f32 to vector<16x128xf32>
    %52 = arith.mulf %51, %46 : vector<16x128xf32>
    %53 = arith.addf %33, %52 : vector<16x128xf32>
    %c27 = arith.constant 27 : index
    %54 = memref.load %arg2[%c27] : memref<81xf32, #tpu.memory_space<smem>>
    %55 = vector.broadcast %54 : f32 to vector<16x128xf32>
    %56 = arith.mulf %55, %46 : vector<16x128xf32>
    %57 = arith.addf %35, %56 : vector<16x128xf32>
    %c54 = arith.constant 54 : index
    %58 = memref.load %arg2[%c54] : memref<81xf32, #tpu.memory_space<smem>>
    %59 = vector.broadcast %58 : f32 to vector<16x128xf32>
    %60 = arith.mulf %59, %46 : vector<16x128xf32>
    %61 = arith.addf %37, %60 : vector<16x128xf32>
    %c1_25 = arith.constant 1 : index
    %62 = memref.load %arg2[%c1_25] : memref<81xf32, #tpu.memory_space<smem>>
    %63 = vector.broadcast %62 : f32 to vector<16x128xf32>
    %64 = arith.mulf %63, %40 : vector<16x128xf32>
    %65 = arith.addf %53, %64 : vector<16x128xf32>
    %c28 = arith.constant 28 : index
    %66 = memref.load %arg2[%c28] : memref<81xf32, #tpu.memory_space<smem>>
    %67 = vector.broadcast %66 : f32 to vector<16x128xf32>
    %68 = arith.mulf %67, %40 : vector<16x128xf32>
    %69 = arith.addf %57, %68 : vector<16x128xf32>
    %c55 = arith.constant 55 : index
    %70 = memref.load %arg2[%c55] : memref<81xf32, #tpu.memory_space<smem>>
    %71 = vector.broadcast %70 : f32 to vector<16x128xf32>
    %72 = arith.mulf %71, %40 : vector<16x128xf32>
    %73 = arith.addf %61, %72 : vector<16x128xf32>
    %c2_26 = arith.constant 2 : index
    %74 = memref.load %arg2[%c2_26] : memref<81xf32, #tpu.memory_space<smem>>
    %75 = vector.broadcast %74 : f32 to vector<16x128xf32>
    %76 = arith.mulf %75, %49 : vector<16x128xf32>
    %77 = arith.addf %65, %76 : vector<16x128xf32>
    %c29 = arith.constant 29 : index
    %78 = memref.load %arg2[%c29] : memref<81xf32, #tpu.memory_space<smem>>
    %79 = vector.broadcast %78 : f32 to vector<16x128xf32>
    %80 = arith.mulf %79, %49 : vector<16x128xf32>
    %81 = arith.addf %69, %80 : vector<16x128xf32>
    %c56 = arith.constant 56 : index
    %82 = memref.load %arg2[%c56] : memref<81xf32, #tpu.memory_space<smem>>
    %83 = vector.broadcast %82 : f32 to vector<16x128xf32>
    %84 = arith.mulf %83, %49 : vector<16x128xf32>
    %85 = arith.addf %73, %84 : vector<16x128xf32>
    %c1_i32_27 = arith.constant 1 : i32
    %86 = tpu.dynamic_rotate %27 by %c1_i32_27 dim 1 : vector<16x128xf32>, i32 -> vector<16x128xf32>
    %cst_28 = arith.constant 0.000000e+00 : f32
    %87 = vector.broadcast %cst_28 : f32 to vector<16x128xf32>
    %88 = arith.select %18, %86, %87 : vector<16x128xi1>, vector<16x128xf32>
    %c127_i32_29 = arith.constant 127 : i32
    %89 = tpu.dynamic_rotate %27 by %c127_i32_29 dim 1 : vector<16x128xf32>, i32 -> vector<16x128xf32>
    %cst_30 = arith.constant 0.000000e+00 : f32
    %90 = vector.broadcast %cst_30 : f32 to vector<16x128xf32>
    %91 = arith.select %20, %89, %90 : vector<16x128xi1>, vector<16x128xf32>
    %c3 = arith.constant 3 : index
    %92 = memref.load %arg2[%c3] : memref<81xf32, #tpu.memory_space<smem>>
    %93 = vector.broadcast %92 : f32 to vector<16x128xf32>
    %94 = arith.mulf %93, %88 : vector<16x128xf32>
    %95 = arith.addf %77, %94 : vector<16x128xf32>
    %c30 = arith.constant 30 : index
    %96 = memref.load %arg2[%c30] : memref<81xf32, #tpu.memory_space<smem>>
    %97 = vector.broadcast %96 : f32 to vector<16x128xf32>
    %98 = arith.mulf %97, %88 : vector<16x128xf32>
    %99 = arith.addf %81, %98 : vector<16x128xf32>
    %c57 = arith.constant 57 : index
    %100 = memref.load %arg2[%c57] : memref<81xf32, #tpu.memory_space<smem>>
    %101 = vector.broadcast %100 : f32 to vector<16x128xf32>
    %102 = arith.mulf %101, %88 : vector<16x128xf32>
    %103 = arith.addf %85, %102 : vector<16x128xf32>
    %c4 = arith.constant 4 : index
    %104 = memref.load %arg2[%c4] : memref<81xf32, #tpu.memory_space<smem>>
    %105 = vector.broadcast %104 : f32 to vector<16x128xf32>
    %106 = arith.mulf %105, %27 : vector<16x128xf32>
    %107 = arith.addf %95, %106 : vector<16x128xf32>
    %c31 = arith.constant 31 : index
    %108 = memref.load %arg2[%c31] : memref<81xf32, #tpu.memory_space<smem>>
    %109 = vector.broadcast %108 : f32 to vector<16x128xf32>
    %110 = arith.mulf %109, %27 : vector<16x128xf32>
    %111 = arith.addf %99, %110 : vector<16x128xf32>
    %c58 = arith.constant 58 : index
    %112 = memref.load %arg2[%c58] : memref<81xf32, #tpu.memory_space<smem>>
    %113 = vector.broadcast %112 : f32 to vector<16x128xf32>
    %114 = arith.mulf %113, %27 : vector<16x128xf32>
    %115 = arith.addf %103, %114 : vector<16x128xf32>
    %c5 = arith.constant 5 : index
    %116 = memref.load %arg2[%c5] : memref<81xf32, #tpu.memory_space<smem>>
    %117 = vector.broadcast %116 : f32 to vector<16x128xf32>
    %118 = arith.mulf %117, %91 : vector<16x128xf32>
    %119 = arith.addf %107, %118 : vector<16x128xf32>
    %c32 = arith.constant 32 : index
    %120 = memref.load %arg2[%c32] : memref<81xf32, #tpu.memory_space<smem>>
    %121 = vector.broadcast %120 : f32 to vector<16x128xf32>
    %122 = arith.mulf %121, %91 : vector<16x128xf32>
    %123 = arith.addf %111, %122 : vector<16x128xf32>
    %c59 = arith.constant 59 : index
    %124 = memref.load %arg2[%c59] : memref<81xf32, #tpu.memory_space<smem>>
    %125 = vector.broadcast %124 : f32 to vector<16x128xf32>
    %126 = arith.mulf %125, %91 : vector<16x128xf32>
    %127 = arith.addf %115, %126 : vector<16x128xf32>
    %c1_i32_31 = arith.constant 1 : i32
    %128 = tpu.dynamic_rotate %43 by %c1_i32_31 dim 1 : vector<16x128xf32>, i32 -> vector<16x128xf32>
    %cst_32 = arith.constant 0.000000e+00 : f32
    %129 = vector.broadcast %cst_32 : f32 to vector<16x128xf32>
    %130 = arith.select %18, %128, %129 : vector<16x128xi1>, vector<16x128xf32>
    %c127_i32_33 = arith.constant 127 : i32
    %131 = tpu.dynamic_rotate %43 by %c127_i32_33 dim 1 : vector<16x128xf32>, i32 -> vector<16x128xf32>
    %cst_34 = arith.constant 0.000000e+00 : f32
    %132 = vector.broadcast %cst_34 : f32 to vector<16x128xf32>
    %133 = arith.select %20, %131, %132 : vector<16x128xi1>, vector<16x128xf32>
    %c6 = arith.constant 6 : index
    %134 = memref.load %arg2[%c6] : memref<81xf32, #tpu.memory_space<smem>>
    %135 = vector.broadcast %134 : f32 to vector<16x128xf32>
    %136 = arith.mulf %135, %130 : vector<16x128xf32>
    %137 = arith.addf %119, %136 : vector<16x128xf32>
    %c33 = arith.constant 33 : index
    %138 = memref.load %arg2[%c33] : memref<81xf32, #tpu.memory_space<smem>>
    %139 = vector.broadcast %138 : f32 to vector<16x128xf32>
    %140 = arith.mulf %139, %130 : vector<16x128xf32>
    %141 = arith.addf %123, %140 : vector<16x128xf32>
    %c60 = arith.constant 60 : index
    %142 = memref.load %arg2[%c60] : memref<81xf32, #tpu.memory_space<smem>>
    %143 = vector.broadcast %142 : f32 to vector<16x128xf32>
    %144 = arith.mulf %143, %130 : vector<16x128xf32>
    %145 = arith.addf %127, %144 : vector<16x128xf32>
    %c7 = arith.constant 7 : index
    %146 = memref.load %arg2[%c7] : memref<81xf32, #tpu.memory_space<smem>>
    %147 = vector.broadcast %146 : f32 to vector<16x128xf32>
    %148 = arith.mulf %147, %43 : vector<16x128xf32>
    %149 = arith.addf %137, %148 : vector<16x128xf32>
    %c34 = arith.constant 34 : index
    %150 = memref.load %arg2[%c34] : memref<81xf32, #tpu.memory_space<smem>>
    %151 = vector.broadcast %150 : f32 to vector<16x128xf32>
    %152 = arith.mulf %151, %43 : vector<16x128xf32>
    %153 = arith.addf %141, %152 : vector<16x128xf32>
    %c61 = arith.constant 61 : index
    %154 = memref.load %arg2[%c61] : memref<81xf32, #tpu.memory_space<smem>>
    %155 = vector.broadcast %154 : f32 to vector<16x128xf32>
    %156 = arith.mulf %155, %43 : vector<16x128xf32>
    %157 = arith.addf %145, %156 : vector<16x128xf32>
    %c8 = arith.constant 8 : index
    %158 = memref.load %arg2[%c8] : memref<81xf32, #tpu.memory_space<smem>>
    %159 = vector.broadcast %158 : f32 to vector<16x128xf32>
    %160 = arith.mulf %159, %133 : vector<16x128xf32>
    %161 = arith.addf %149, %160 : vector<16x128xf32>
    %c35 = arith.constant 35 : index
    %162 = memref.load %arg2[%c35] : memref<81xf32, #tpu.memory_space<smem>>
    %163 = vector.broadcast %162 : f32 to vector<16x128xf32>
    %164 = arith.mulf %163, %133 : vector<16x128xf32>
    %165 = arith.addf %153, %164 : vector<16x128xf32>
    %c62 = arith.constant 62 : index
    %166 = memref.load %arg2[%c62] : memref<81xf32, #tpu.memory_space<smem>>
    %167 = vector.broadcast %166 : f32 to vector<16x128xf32>
    %168 = arith.mulf %167, %133 : vector<16x128xf32>
    %169 = arith.addf %157, %168 : vector<16x128xf32>
    %c1_i32_35 = arith.constant 1 : i32
    %170 = tpu.dynamic_rotate %29 by %c1_i32_35 dim 0 : vector<16x128xf32>, i32 -> vector<16x128xf32>
    %cst_36 = arith.constant 0.000000e+00 : f32
    %171 = vector.broadcast %cst_36 : f32 to vector<16x128xf32>
    %172 = arith.select %23, %170, %171 : vector<16x128xi1>, vector<16x128xf32>
    %c15_i32_37 = arith.constant 15 : i32
    %173 = tpu.dynamic_rotate %29 by %c15_i32_37 dim 0 : vector<16x128xf32>, i32 -> vector<16x128xf32>
    %cst_38 = arith.constant 0.000000e+00 : f32
    %174 = vector.broadcast %cst_38 : f32 to vector<16x128xf32>
    %175 = arith.select %25, %173, %174 : vector<16x128xi1>, vector<16x128xf32>
    %c1_i32_39 = arith.constant 1 : i32
    %176 = tpu.dynamic_rotate %172 by %c1_i32_39 dim 1 : vector<16x128xf32>, i32 -> vector<16x128xf32>
    %cst_40 = arith.constant 0.000000e+00 : f32
    %177 = vector.broadcast %cst_40 : f32 to vector<16x128xf32>
    %178 = arith.select %18, %176, %177 : vector<16x128xi1>, vector<16x128xf32>
    %c127_i32_41 = arith.constant 127 : i32
    %179 = tpu.dynamic_rotate %172 by %c127_i32_41 dim 1 : vector<16x128xf32>, i32 -> vector<16x128xf32>
    %cst_42 = arith.constant 0.000000e+00 : f32
    %180 = vector.broadcast %cst_42 : f32 to vector<16x128xf32>
    %181 = arith.select %20, %179, %180 : vector<16x128xi1>, vector<16x128xf32>
    %c9 = arith.constant 9 : index
    %182 = memref.load %arg2[%c9] : memref<81xf32, #tpu.memory_space<smem>>
    %183 = vector.broadcast %182 : f32 to vector<16x128xf32>
    %184 = arith.mulf %183, %178 : vector<16x128xf32>
    %185 = arith.addf %161, %184 : vector<16x128xf32>
    %c36 = arith.constant 36 : index
    %186 = memref.load %arg2[%c36] : memref<81xf32, #tpu.memory_space<smem>>
    %187 = vector.broadcast %186 : f32 to vector<16x128xf32>
    %188 = arith.mulf %187, %178 : vector<16x128xf32>
    %189 = arith.addf %165, %188 : vector<16x128xf32>
    %c63 = arith.constant 63 : index
    %190 = memref.load %arg2[%c63] : memref<81xf32, #tpu.memory_space<smem>>
    %191 = vector.broadcast %190 : f32 to vector<16x128xf32>
    %192 = arith.mulf %191, %178 : vector<16x128xf32>
    %193 = arith.addf %169, %192 : vector<16x128xf32>
    %c10 = arith.constant 10 : index
    %194 = memref.load %arg2[%c10] : memref<81xf32, #tpu.memory_space<smem>>
    %195 = vector.broadcast %194 : f32 to vector<16x128xf32>
    %196 = arith.mulf %195, %172 : vector<16x128xf32>
    %197 = arith.addf %185, %196 : vector<16x128xf32>
    %c37 = arith.constant 37 : index
    %198 = memref.load %arg2[%c37] : memref<81xf32, #tpu.memory_space<smem>>
    %199 = vector.broadcast %198 : f32 to vector<16x128xf32>
    %200 = arith.mulf %199, %172 : vector<16x128xf32>
    %201 = arith.addf %189, %200 : vector<16x128xf32>
    %c64 = arith.constant 64 : index
    %202 = memref.load %arg2[%c64] : memref<81xf32, #tpu.memory_space<smem>>
    %203 = vector.broadcast %202 : f32 to vector<16x128xf32>
    %204 = arith.mulf %203, %172 : vector<16x128xf32>
    %205 = arith.addf %193, %204 : vector<16x128xf32>
    %c11 = arith.constant 11 : index
    %206 = memref.load %arg2[%c11] : memref<81xf32, #tpu.memory_space<smem>>
    %207 = vector.broadcast %206 : f32 to vector<16x128xf32>
    %208 = arith.mulf %207, %181 : vector<16x128xf32>
    %209 = arith.addf %197, %208 : vector<16x128xf32>
    %c38 = arith.constant 38 : index
    %210 = memref.load %arg2[%c38] : memref<81xf32, #tpu.memory_space<smem>>
    %211 = vector.broadcast %210 : f32 to vector<16x128xf32>
    %212 = arith.mulf %211, %181 : vector<16x128xf32>
    %213 = arith.addf %201, %212 : vector<16x128xf32>
    %c65 = arith.constant 65 : index
    %214 = memref.load %arg2[%c65] : memref<81xf32, #tpu.memory_space<smem>>
    %215 = vector.broadcast %214 : f32 to vector<16x128xf32>
    %216 = arith.mulf %215, %181 : vector<16x128xf32>
    %217 = arith.addf %205, %216 : vector<16x128xf32>
    %c1_i32_43 = arith.constant 1 : i32
    %218 = tpu.dynamic_rotate %29 by %c1_i32_43 dim 1 : vector<16x128xf32>, i32 -> vector<16x128xf32>
    %cst_44 = arith.constant 0.000000e+00 : f32
    %219 = vector.broadcast %cst_44 : f32 to vector<16x128xf32>
    %220 = arith.select %18, %218, %219 : vector<16x128xi1>, vector<16x128xf32>
    %c127_i32_45 = arith.constant 127 : i32
    %221 = tpu.dynamic_rotate %29 by %c127_i32_45 dim 1 : vector<16x128xf32>, i32 -> vector<16x128xf32>
    %cst_46 = arith.constant 0.000000e+00 : f32
    %222 = vector.broadcast %cst_46 : f32 to vector<16x128xf32>
    %223 = arith.select %20, %221, %222 : vector<16x128xi1>, vector<16x128xf32>
    %c12 = arith.constant 12 : index
    %224 = memref.load %arg2[%c12] : memref<81xf32, #tpu.memory_space<smem>>
    %225 = vector.broadcast %224 : f32 to vector<16x128xf32>
    %226 = arith.mulf %225, %220 : vector<16x128xf32>
    %227 = arith.addf %209, %226 : vector<16x128xf32>
    %c39 = arith.constant 39 : index
    %228 = memref.load %arg2[%c39] : memref<81xf32, #tpu.memory_space<smem>>
    %229 = vector.broadcast %228 : f32 to vector<16x128xf32>
    %230 = arith.mulf %229, %220 : vector<16x128xf32>
    %231 = arith.addf %213, %230 : vector<16x128xf32>
    %c66 = arith.constant 66 : index
    %232 = memref.load %arg2[%c66] : memref<81xf32, #tpu.memory_space<smem>>
    %233 = vector.broadcast %232 : f32 to vector<16x128xf32>
    %234 = arith.mulf %233, %220 : vector<16x128xf32>
    %235 = arith.addf %217, %234 : vector<16x128xf32>
    %c13 = arith.constant 13 : index
    %236 = memref.load %arg2[%c13] : memref<81xf32, #tpu.memory_space<smem>>
    %237 = vector.broadcast %236 : f32 to vector<16x128xf32>
    %238 = arith.mulf %237, %29 : vector<16x128xf32>
    %239 = arith.addf %227, %238 : vector<16x128xf32>
    %c40 = arith.constant 40 : index
    %240 = memref.load %arg2[%c40] : memref<81xf32, #tpu.memory_space<smem>>
    %241 = vector.broadcast %240 : f32 to vector<16x128xf32>
    %242 = arith.mulf %241, %29 : vector<16x128xf32>
    %243 = arith.addf %231, %242 : vector<16x128xf32>
    %c67 = arith.constant 67 : index
    %244 = memref.load %arg2[%c67] : memref<81xf32, #tpu.memory_space<smem>>
    %245 = vector.broadcast %244 : f32 to vector<16x128xf32>
    %246 = arith.mulf %245, %29 : vector<16x128xf32>
    %247 = arith.addf %235, %246 : vector<16x128xf32>
    %c14 = arith.constant 14 : index
    %248 = memref.load %arg2[%c14] : memref<81xf32, #tpu.memory_space<smem>>
    %249 = vector.broadcast %248 : f32 to vector<16x128xf32>
    %250 = arith.mulf %249, %223 : vector<16x128xf32>
    %251 = arith.addf %239, %250 : vector<16x128xf32>
    %c41 = arith.constant 41 : index
    %252 = memref.load %arg2[%c41] : memref<81xf32, #tpu.memory_space<smem>>
    %253 = vector.broadcast %252 : f32 to vector<16x128xf32>
    %254 = arith.mulf %253, %223 : vector<16x128xf32>
    %255 = arith.addf %243, %254 : vector<16x128xf32>
    %c68 = arith.constant 68 : index
    %256 = memref.load %arg2[%c68] : memref<81xf32, #tpu.memory_space<smem>>
    %257 = vector.broadcast %256 : f32 to vector<16x128xf32>
    %258 = arith.mulf %257, %223 : vector<16x128xf32>
    %259 = arith.addf %247, %258 : vector<16x128xf32>
    %c1_i32_47 = arith.constant 1 : i32
    %260 = tpu.dynamic_rotate %175 by %c1_i32_47 dim 1 : vector<16x128xf32>, i32 -> vector<16x128xf32>
    %cst_48 = arith.constant 0.000000e+00 : f32
    %261 = vector.broadcast %cst_48 : f32 to vector<16x128xf32>
    %262 = arith.select %18, %260, %261 : vector<16x128xi1>, vector<16x128xf32>
    %c127_i32_49 = arith.constant 127 : i32
    %263 = tpu.dynamic_rotate %175 by %c127_i32_49 dim 1 : vector<16x128xf32>, i32 -> vector<16x128xf32>
    %cst_50 = arith.constant 0.000000e+00 : f32
    %264 = vector.broadcast %cst_50 : f32 to vector<16x128xf32>
    %265 = arith.select %20, %263, %264 : vector<16x128xi1>, vector<16x128xf32>
    %c15 = arith.constant 15 : index
    %266 = memref.load %arg2[%c15] : memref<81xf32, #tpu.memory_space<smem>>
    %267 = vector.broadcast %266 : f32 to vector<16x128xf32>
    %268 = arith.mulf %267, %262 : vector<16x128xf32>
    %269 = arith.addf %251, %268 : vector<16x128xf32>
    %c42 = arith.constant 42 : index
    %270 = memref.load %arg2[%c42] : memref<81xf32, #tpu.memory_space<smem>>
    %271 = vector.broadcast %270 : f32 to vector<16x128xf32>
    %272 = arith.mulf %271, %262 : vector<16x128xf32>
    %273 = arith.addf %255, %272 : vector<16x128xf32>
    %c69 = arith.constant 69 : index
    %274 = memref.load %arg2[%c69] : memref<81xf32, #tpu.memory_space<smem>>
    %275 = vector.broadcast %274 : f32 to vector<16x128xf32>
    %276 = arith.mulf %275, %262 : vector<16x128xf32>
    %277 = arith.addf %259, %276 : vector<16x128xf32>
    %c16 = arith.constant 16 : index
    %278 = memref.load %arg2[%c16] : memref<81xf32, #tpu.memory_space<smem>>
    %279 = vector.broadcast %278 : f32 to vector<16x128xf32>
    %280 = arith.mulf %279, %175 : vector<16x128xf32>
    %281 = arith.addf %269, %280 : vector<16x128xf32>
    %c43 = arith.constant 43 : index
    %282 = memref.load %arg2[%c43] : memref<81xf32, #tpu.memory_space<smem>>
    %283 = vector.broadcast %282 : f32 to vector<16x128xf32>
    %284 = arith.mulf %283, %175 : vector<16x128xf32>
    %285 = arith.addf %273, %284 : vector<16x128xf32>
    %c70 = arith.constant 70 : index
    %286 = memref.load %arg2[%c70] : memref<81xf32, #tpu.memory_space<smem>>
    %287 = vector.broadcast %286 : f32 to vector<16x128xf32>
    %288 = arith.mulf %287, %175 : vector<16x128xf32>
    %289 = arith.addf %277, %288 : vector<16x128xf32>
    %c17 = arith.constant 17 : index
    %290 = memref.load %arg2[%c17] : memref<81xf32, #tpu.memory_space<smem>>
    %291 = vector.broadcast %290 : f32 to vector<16x128xf32>
    %292 = arith.mulf %291, %265 : vector<16x128xf32>
    %293 = arith.addf %281, %292 : vector<16x128xf32>
    %c44 = arith.constant 44 : index
    %294 = memref.load %arg2[%c44] : memref<81xf32, #tpu.memory_space<smem>>
    %295 = vector.broadcast %294 : f32 to vector<16x128xf32>
    %296 = arith.mulf %295, %265 : vector<16x128xf32>
    %297 = arith.addf %285, %296 : vector<16x128xf32>
    %c71 = arith.constant 71 : index
    %298 = memref.load %arg2[%c71] : memref<81xf32, #tpu.memory_space<smem>>
    %299 = vector.broadcast %298 : f32 to vector<16x128xf32>
    %300 = arith.mulf %299, %265 : vector<16x128xf32>
    %301 = arith.addf %289, %300 : vector<16x128xf32>
    %c1_i32_51 = arith.constant 1 : i32
    %302 = tpu.dynamic_rotate %31 by %c1_i32_51 dim 0 : vector<16x128xf32>, i32 -> vector<16x128xf32>
    %cst_52 = arith.constant 0.000000e+00 : f32
    %303 = vector.broadcast %cst_52 : f32 to vector<16x128xf32>
    %304 = arith.select %23, %302, %303 : vector<16x128xi1>, vector<16x128xf32>
    %c15_i32_53 = arith.constant 15 : i32
    %305 = tpu.dynamic_rotate %31 by %c15_i32_53 dim 0 : vector<16x128xf32>, i32 -> vector<16x128xf32>
    %cst_54 = arith.constant 0.000000e+00 : f32
    %306 = vector.broadcast %cst_54 : f32 to vector<16x128xf32>
    %307 = arith.select %25, %305, %306 : vector<16x128xi1>, vector<16x128xf32>
    %c1_i32_55 = arith.constant 1 : i32
    %308 = tpu.dynamic_rotate %304 by %c1_i32_55 dim 1 : vector<16x128xf32>, i32 -> vector<16x128xf32>
    %cst_56 = arith.constant 0.000000e+00 : f32
    %309 = vector.broadcast %cst_56 : f32 to vector<16x128xf32>
    %310 = arith.select %18, %308, %309 : vector<16x128xi1>, vector<16x128xf32>
    %c127_i32_57 = arith.constant 127 : i32
    %311 = tpu.dynamic_rotate %304 by %c127_i32_57 dim 1 : vector<16x128xf32>, i32 -> vector<16x128xf32>
    %cst_58 = arith.constant 0.000000e+00 : f32
    %312 = vector.broadcast %cst_58 : f32 to vector<16x128xf32>
    %313 = arith.select %20, %311, %312 : vector<16x128xi1>, vector<16x128xf32>
    %c18 = arith.constant 18 : index
    %314 = memref.load %arg2[%c18] : memref<81xf32, #tpu.memory_space<smem>>
    %315 = vector.broadcast %314 : f32 to vector<16x128xf32>
    %316 = arith.mulf %315, %310 : vector<16x128xf32>
    %317 = arith.addf %293, %316 : vector<16x128xf32>
    %c45 = arith.constant 45 : index
    %318 = memref.load %arg2[%c45] : memref<81xf32, #tpu.memory_space<smem>>
    %319 = vector.broadcast %318 : f32 to vector<16x128xf32>
    %320 = arith.mulf %319, %310 : vector<16x128xf32>
    %321 = arith.addf %297, %320 : vector<16x128xf32>
    %c72 = arith.constant 72 : index
    %322 = memref.load %arg2[%c72] : memref<81xf32, #tpu.memory_space<smem>>
    %323 = vector.broadcast %322 : f32 to vector<16x128xf32>
    %324 = arith.mulf %323, %310 : vector<16x128xf32>
    %325 = arith.addf %301, %324 : vector<16x128xf32>
    %c19 = arith.constant 19 : index
    %326 = memref.load %arg2[%c19] : memref<81xf32, #tpu.memory_space<smem>>
    %327 = vector.broadcast %326 : f32 to vector<16x128xf32>
    %328 = arith.mulf %327, %304 : vector<16x128xf32>
    %329 = arith.addf %317, %328 : vector<16x128xf32>
    %c46 = arith.constant 46 : index
    %330 = memref.load %arg2[%c46] : memref<81xf32, #tpu.memory_space<smem>>
    %331 = vector.broadcast %330 : f32 to vector<16x128xf32>
    %332 = arith.mulf %331, %304 : vector<16x128xf32>
    %333 = arith.addf %321, %332 : vector<16x128xf32>
    %c73 = arith.constant 73 : index
    %334 = memref.load %arg2[%c73] : memref<81xf32, #tpu.memory_space<smem>>
    %335 = vector.broadcast %334 : f32 to vector<16x128xf32>
    %336 = arith.mulf %335, %304 : vector<16x128xf32>
    %337 = arith.addf %325, %336 : vector<16x128xf32>
    %c20 = arith.constant 20 : index
    %338 = memref.load %arg2[%c20] : memref<81xf32, #tpu.memory_space<smem>>
    %339 = vector.broadcast %338 : f32 to vector<16x128xf32>
    %340 = arith.mulf %339, %313 : vector<16x128xf32>
    %341 = arith.addf %329, %340 : vector<16x128xf32>
    %c47 = arith.constant 47 : index
    %342 = memref.load %arg2[%c47] : memref<81xf32, #tpu.memory_space<smem>>
    %343 = vector.broadcast %342 : f32 to vector<16x128xf32>
    %344 = arith.mulf %343, %313 : vector<16x128xf32>
    %345 = arith.addf %333, %344 : vector<16x128xf32>
    %c74 = arith.constant 74 : index
    %346 = memref.load %arg2[%c74] : memref<81xf32, #tpu.memory_space<smem>>
    %347 = vector.broadcast %346 : f32 to vector<16x128xf32>
    %348 = arith.mulf %347, %313 : vector<16x128xf32>
    %349 = arith.addf %337, %348 : vector<16x128xf32>
    %c1_i32_59 = arith.constant 1 : i32
    %350 = tpu.dynamic_rotate %31 by %c1_i32_59 dim 1 : vector<16x128xf32>, i32 -> vector<16x128xf32>
    %cst_60 = arith.constant 0.000000e+00 : f32
    %351 = vector.broadcast %cst_60 : f32 to vector<16x128xf32>
    %352 = arith.select %18, %350, %351 : vector<16x128xi1>, vector<16x128xf32>
    %c127_i32_61 = arith.constant 127 : i32
    %353 = tpu.dynamic_rotate %31 by %c127_i32_61 dim 1 : vector<16x128xf32>, i32 -> vector<16x128xf32>
    %cst_62 = arith.constant 0.000000e+00 : f32
    %354 = vector.broadcast %cst_62 : f32 to vector<16x128xf32>
    %355 = arith.select %20, %353, %354 : vector<16x128xi1>, vector<16x128xf32>
    %c21 = arith.constant 21 : index
    %356 = memref.load %arg2[%c21] : memref<81xf32, #tpu.memory_space<smem>>
    %357 = vector.broadcast %356 : f32 to vector<16x128xf32>
    %358 = arith.mulf %357, %352 : vector<16x128xf32>
    %359 = arith.addf %341, %358 : vector<16x128xf32>
    %c48 = arith.constant 48 : index
    %360 = memref.load %arg2[%c48] : memref<81xf32, #tpu.memory_space<smem>>
    %361 = vector.broadcast %360 : f32 to vector<16x128xf32>
    %362 = arith.mulf %361, %352 : vector<16x128xf32>
    %363 = arith.addf %345, %362 : vector<16x128xf32>
    %c75 = arith.constant 75 : index
    %364 = memref.load %arg2[%c75] : memref<81xf32, #tpu.memory_space<smem>>
    %365 = vector.broadcast %364 : f32 to vector<16x128xf32>
    %366 = arith.mulf %365, %352 : vector<16x128xf32>
    %367 = arith.addf %349, %366 : vector<16x128xf32>
    %c22 = arith.constant 22 : index
    %368 = memref.load %arg2[%c22] : memref<81xf32, #tpu.memory_space<smem>>
    %369 = vector.broadcast %368 : f32 to vector<16x128xf32>
    %370 = arith.mulf %369, %31 : vector<16x128xf32>
    %371 = arith.addf %359, %370 : vector<16x128xf32>
    %c49 = arith.constant 49 : index
    %372 = memref.load %arg2[%c49] : memref<81xf32, #tpu.memory_space<smem>>
    %373 = vector.broadcast %372 : f32 to vector<16x128xf32>
    %374 = arith.mulf %373, %31 : vector<16x128xf32>
    %375 = arith.addf %363, %374 : vector<16x128xf32>
    %c76 = arith.constant 76 : index
    %376 = memref.load %arg2[%c76] : memref<81xf32, #tpu.memory_space<smem>>
    %377 = vector.broadcast %376 : f32 to vector<16x128xf32>
    %378 = arith.mulf %377, %31 : vector<16x128xf32>
    %379 = arith.addf %367, %378 : vector<16x128xf32>
    %c23 = arith.constant 23 : index
    %380 = memref.load %arg2[%c23] : memref<81xf32, #tpu.memory_space<smem>>
    %381 = vector.broadcast %380 : f32 to vector<16x128xf32>
    %382 = arith.mulf %381, %355 : vector<16x128xf32>
    %383 = arith.addf %371, %382 : vector<16x128xf32>
    %c50 = arith.constant 50 : index
    %384 = memref.load %arg2[%c50] : memref<81xf32, #tpu.memory_space<smem>>
    %385 = vector.broadcast %384 : f32 to vector<16x128xf32>
    %386 = arith.mulf %385, %355 : vector<16x128xf32>
    %387 = arith.addf %375, %386 : vector<16x128xf32>
    %c77 = arith.constant 77 : index
    %388 = memref.load %arg2[%c77] : memref<81xf32, #tpu.memory_space<smem>>
    %389 = vector.broadcast %388 : f32 to vector<16x128xf32>
    %390 = arith.mulf %389, %355 : vector<16x128xf32>
    %391 = arith.addf %379, %390 : vector<16x128xf32>
    %c1_i32_63 = arith.constant 1 : i32
    %392 = tpu.dynamic_rotate %307 by %c1_i32_63 dim 1 : vector<16x128xf32>, i32 -> vector<16x128xf32>
    %cst_64 = arith.constant 0.000000e+00 : f32
    %393 = vector.broadcast %cst_64 : f32 to vector<16x128xf32>
    %394 = arith.select %18, %392, %393 : vector<16x128xi1>, vector<16x128xf32>
    %c127_i32_65 = arith.constant 127 : i32
    %395 = tpu.dynamic_rotate %307 by %c127_i32_65 dim 1 : vector<16x128xf32>, i32 -> vector<16x128xf32>
    %cst_66 = arith.constant 0.000000e+00 : f32
    %396 = vector.broadcast %cst_66 : f32 to vector<16x128xf32>
    %397 = arith.select %20, %395, %396 : vector<16x128xi1>, vector<16x128xf32>
    %c24 = arith.constant 24 : index
    %398 = memref.load %arg2[%c24] : memref<81xf32, #tpu.memory_space<smem>>
    %399 = vector.broadcast %398 : f32 to vector<16x128xf32>
    %400 = arith.mulf %399, %394 : vector<16x128xf32>
    %401 = arith.addf %383, %400 : vector<16x128xf32>
    %c51 = arith.constant 51 : index
    %402 = memref.load %arg2[%c51] : memref<81xf32, #tpu.memory_space<smem>>
    %403 = vector.broadcast %402 : f32 to vector<16x128xf32>
    %404 = arith.mulf %403, %394 : vector<16x128xf32>
    %405 = arith.addf %387, %404 : vector<16x128xf32>
    %c78 = arith.constant 78 : index
    %406 = memref.load %arg2[%c78] : memref<81xf32, #tpu.memory_space<smem>>
    %407 = vector.broadcast %406 : f32 to vector<16x128xf32>
    %408 = arith.mulf %407, %394 : vector<16x128xf32>
    %409 = arith.addf %391, %408 : vector<16x128xf32>
    %c25 = arith.constant 25 : index
    %410 = memref.load %arg2[%c25] : memref<81xf32, #tpu.memory_space<smem>>
    %411 = vector.broadcast %410 : f32 to vector<16x128xf32>
    %412 = arith.mulf %411, %307 : vector<16x128xf32>
    %413 = arith.addf %401, %412 : vector<16x128xf32>
    %c52 = arith.constant 52 : index
    %414 = memref.load %arg2[%c52] : memref<81xf32, #tpu.memory_space<smem>>
    %415 = vector.broadcast %414 : f32 to vector<16x128xf32>
    %416 = arith.mulf %415, %307 : vector<16x128xf32>
    %417 = arith.addf %405, %416 : vector<16x128xf32>
    %c79 = arith.constant 79 : index
    %418 = memref.load %arg2[%c79] : memref<81xf32, #tpu.memory_space<smem>>
    %419 = vector.broadcast %418 : f32 to vector<16x128xf32>
    %420 = arith.mulf %419, %307 : vector<16x128xf32>
    %421 = arith.addf %409, %420 : vector<16x128xf32>
    %c26 = arith.constant 26 : index
    %422 = memref.load %arg2[%c26] : memref<81xf32, #tpu.memory_space<smem>>
    %423 = vector.broadcast %422 : f32 to vector<16x128xf32>
    %424 = arith.mulf %423, %397 : vector<16x128xf32>
    %425 = arith.addf %413, %424 : vector<16x128xf32>
    %c53 = arith.constant 53 : index
    %426 = memref.load %arg2[%c53] : memref<81xf32, #tpu.memory_space<smem>>
    %427 = vector.broadcast %426 : f32 to vector<16x128xf32>
    %428 = arith.mulf %427, %397 : vector<16x128xf32>
    %429 = arith.addf %417, %428 : vector<16x128xf32>
    %c80 = arith.constant 80 : index
    %430 = memref.load %arg2[%c80] : memref<81xf32, #tpu.memory_space<smem>>
    %431 = vector.broadcast %430 : f32 to vector<16x128xf32>
    %432 = arith.mulf %431, %397 : vector<16x128xf32>
    %433 = arith.addf %421, %432 : vector<16x128xf32>
    %cst_67 = arith.constant 0.000000e+00 : f32
    %434 = vector.broadcast %cst_67 : f32 to vector<16x128xf32>
    %435 = arith.maximumf %425, %434 : vector<16x128xf32>
    %cst_68 = arith.constant 0.000000e+00 : f32
    %436 = vector.broadcast %cst_68 : f32 to vector<16x128xf32>
    %437 = arith.maximumf %429, %436 : vector<16x128xf32>
    %cst_69 = arith.constant 0.000000e+00 : f32
    %438 = vector.broadcast %cst_69 : f32 to vector<16x128xf32>
    %439 = arith.maximumf %433, %438 : vector<16x128xf32>
    %c0_70 = arith.constant 0 : index
    %440 = memref.load %arg5[%c0_70] : memref<3xf32, #tpu.memory_space<smem>>
    %441 = vector.broadcast %440 : f32 to vector<16x128xf32>
    %c1_71 = arith.constant 1 : index
    %442 = memref.load %arg5[%c1_71] : memref<3xf32, #tpu.memory_space<smem>>
    %443 = vector.broadcast %442 : f32 to vector<16x128xf32>
    %c2_72 = arith.constant 2 : index
    %444 = memref.load %arg5[%c2_72] : memref<3xf32, #tpu.memory_space<smem>>
    %445 = vector.broadcast %444 : f32 to vector<16x128xf32>
    %c1_i32_73 = arith.constant 1 : i32
    %446 = tpu.dynamic_rotate %435 by %c1_i32_73 dim 0 : vector<16x128xf32>, i32 -> vector<16x128xf32>
    %cst_74 = arith.constant 0.000000e+00 : f32
    %447 = vector.broadcast %cst_74 : f32 to vector<16x128xf32>
    %448 = arith.select %23, %446, %447 : vector<16x128xi1>, vector<16x128xf32>
    %c15_i32_75 = arith.constant 15 : i32
    %449 = tpu.dynamic_rotate %435 by %c15_i32_75 dim 0 : vector<16x128xf32>, i32 -> vector<16x128xf32>
    %cst_76 = arith.constant 0.000000e+00 : f32
    %450 = vector.broadcast %cst_76 : f32 to vector<16x128xf32>
    %451 = arith.select %25, %449, %450 : vector<16x128xi1>, vector<16x128xf32>
    %c1_i32_77 = arith.constant 1 : i32
    %452 = tpu.dynamic_rotate %448 by %c1_i32_77 dim 1 : vector<16x128xf32>, i32 -> vector<16x128xf32>
    %cst_78 = arith.constant 0.000000e+00 : f32
    %453 = vector.broadcast %cst_78 : f32 to vector<16x128xf32>
    %454 = arith.select %18, %452, %453 : vector<16x128xi1>, vector<16x128xf32>
    %c127_i32_79 = arith.constant 127 : i32
    %455 = tpu.dynamic_rotate %448 by %c127_i32_79 dim 1 : vector<16x128xf32>, i32 -> vector<16x128xf32>
    %cst_80 = arith.constant 0.000000e+00 : f32
    %456 = vector.broadcast %cst_80 : f32 to vector<16x128xf32>
    %457 = arith.select %20, %455, %456 : vector<16x128xi1>, vector<16x128xf32>
    %c0_81 = arith.constant 0 : index
    %458 = memref.load %arg4[%c0_81] : memref<81xf32, #tpu.memory_space<smem>>
    %459 = vector.broadcast %458 : f32 to vector<16x128xf32>
    %460 = arith.mulf %459, %454 : vector<16x128xf32>
    %461 = arith.addf %441, %460 : vector<16x128xf32>
    %c27_82 = arith.constant 27 : index
    %462 = memref.load %arg4[%c27_82] : memref<81xf32, #tpu.memory_space<smem>>
    %463 = vector.broadcast %462 : f32 to vector<16x128xf32>
    %464 = arith.mulf %463, %454 : vector<16x128xf32>
    %465 = arith.addf %443, %464 : vector<16x128xf32>
    %c54_83 = arith.constant 54 : index
    %466 = memref.load %arg4[%c54_83] : memref<81xf32, #tpu.memory_space<smem>>
    %467 = vector.broadcast %466 : f32 to vector<16x128xf32>
    %468 = arith.mulf %467, %454 : vector<16x128xf32>
    %469 = arith.addf %445, %468 : vector<16x128xf32>
    %c1_84 = arith.constant 1 : index
    %470 = memref.load %arg4[%c1_84] : memref<81xf32, #tpu.memory_space<smem>>
    %471 = vector.broadcast %470 : f32 to vector<16x128xf32>
    %472 = arith.mulf %471, %448 : vector<16x128xf32>
    %473 = arith.addf %461, %472 : vector<16x128xf32>
    %c28_85 = arith.constant 28 : index
    %474 = memref.load %arg4[%c28_85] : memref<81xf32, #tpu.memory_space<smem>>
    %475 = vector.broadcast %474 : f32 to vector<16x128xf32>
    %476 = arith.mulf %475, %448 : vector<16x128xf32>
    %477 = arith.addf %465, %476 : vector<16x128xf32>
    %c55_86 = arith.constant 55 : index
    %478 = memref.load %arg4[%c55_86] : memref<81xf32, #tpu.memory_space<smem>>
    %479 = vector.broadcast %478 : f32 to vector<16x128xf32>
    %480 = arith.mulf %479, %448 : vector<16x128xf32>
    %481 = arith.addf %469, %480 : vector<16x128xf32>
    %c2_87 = arith.constant 2 : index
    %482 = memref.load %arg4[%c2_87] : memref<81xf32, #tpu.memory_space<smem>>
    %483 = vector.broadcast %482 : f32 to vector<16x128xf32>
    %484 = arith.mulf %483, %457 : vector<16x128xf32>
    %485 = arith.addf %473, %484 : vector<16x128xf32>
    %c29_88 = arith.constant 29 : index
    %486 = memref.load %arg4[%c29_88] : memref<81xf32, #tpu.memory_space<smem>>
    %487 = vector.broadcast %486 : f32 to vector<16x128xf32>
    %488 = arith.mulf %487, %457 : vector<16x128xf32>
    %489 = arith.addf %477, %488 : vector<16x128xf32>
    %c56_89 = arith.constant 56 : index
    %490 = memref.load %arg4[%c56_89] : memref<81xf32, #tpu.memory_space<smem>>
    %491 = vector.broadcast %490 : f32 to vector<16x128xf32>
    %492 = arith.mulf %491, %457 : vector<16x128xf32>
    %493 = arith.addf %481, %492 : vector<16x128xf32>
    %c1_i32_90 = arith.constant 1 : i32
    %494 = tpu.dynamic_rotate %435 by %c1_i32_90 dim 1 : vector<16x128xf32>, i32 -> vector<16x128xf32>
    %cst_91 = arith.constant 0.000000e+00 : f32
    %495 = vector.broadcast %cst_91 : f32 to vector<16x128xf32>
    %496 = arith.select %18, %494, %495 : vector<16x128xi1>, vector<16x128xf32>
    %c127_i32_92 = arith.constant 127 : i32
    %497 = tpu.dynamic_rotate %435 by %c127_i32_92 dim 1 : vector<16x128xf32>, i32 -> vector<16x128xf32>
    %cst_93 = arith.constant 0.000000e+00 : f32
    %498 = vector.broadcast %cst_93 : f32 to vector<16x128xf32>
    %499 = arith.select %20, %497, %498 : vector<16x128xi1>, vector<16x128xf32>
    %c3_94 = arith.constant 3 : index
    %500 = memref.load %arg4[%c3_94] : memref<81xf32, #tpu.memory_space<smem>>
    %501 = vector.broadcast %500 : f32 to vector<16x128xf32>
    %502 = arith.mulf %501, %496 : vector<16x128xf32>
    %503 = arith.addf %485, %502 : vector<16x128xf32>
    %c30_95 = arith.constant 30 : index
    %504 = memref.load %arg4[%c30_95] : memref<81xf32, #tpu.memory_space<smem>>
    %505 = vector.broadcast %504 : f32 to vector<16x128xf32>
    %506 = arith.mulf %505, %496 : vector<16x128xf32>
    %507 = arith.addf %489, %506 : vector<16x128xf32>
    %c57_96 = arith.constant 57 : index
    %508 = memref.load %arg4[%c57_96] : memref<81xf32, #tpu.memory_space<smem>>
    %509 = vector.broadcast %508 : f32 to vector<16x128xf32>
    %510 = arith.mulf %509, %496 : vector<16x128xf32>
    %511 = arith.addf %493, %510 : vector<16x128xf32>
    %c4_97 = arith.constant 4 : index
    %512 = memref.load %arg4[%c4_97] : memref<81xf32, #tpu.memory_space<smem>>
    %513 = vector.broadcast %512 : f32 to vector<16x128xf32>
    %514 = arith.mulf %513, %435 : vector<16x128xf32>
    %515 = arith.addf %503, %514 : vector<16x128xf32>
    %c31_98 = arith.constant 31 : index
    %516 = memref.load %arg4[%c31_98] : memref<81xf32, #tpu.memory_space<smem>>
    %517 = vector.broadcast %516 : f32 to vector<16x128xf32>
    %518 = arith.mulf %517, %435 : vector<16x128xf32>
    %519 = arith.addf %507, %518 : vector<16x128xf32>
    %c58_99 = arith.constant 58 : index
    %520 = memref.load %arg4[%c58_99] : memref<81xf32, #tpu.memory_space<smem>>
    %521 = vector.broadcast %520 : f32 to vector<16x128xf32>
    %522 = arith.mulf %521, %435 : vector<16x128xf32>
    %523 = arith.addf %511, %522 : vector<16x128xf32>
    %c5_100 = arith.constant 5 : index
    %524 = memref.load %arg4[%c5_100] : memref<81xf32, #tpu.memory_space<smem>>
    %525 = vector.broadcast %524 : f32 to vector<16x128xf32>
    %526 = arith.mulf %525, %499 : vector<16x128xf32>
    %527 = arith.addf %515, %526 : vector<16x128xf32>
    %c32_101 = arith.constant 32 : index
    %528 = memref.load %arg4[%c32_101] : memref<81xf32, #tpu.memory_space<smem>>
    %529 = vector.broadcast %528 : f32 to vector<16x128xf32>
    %530 = arith.mulf %529, %499 : vector<16x128xf32>
    %531 = arith.addf %519, %530 : vector<16x128xf32>
    %c59_102 = arith.constant 59 : index
    %532 = memref.load %arg4[%c59_102] : memref<81xf32, #tpu.memory_space<smem>>
    %533 = vector.broadcast %532 : f32 to vector<16x128xf32>
    %534 = arith.mulf %533, %499 : vector<16x128xf32>
    %535 = arith.addf %523, %534 : vector<16x128xf32>
    %c1_i32_103 = arith.constant 1 : i32
    %536 = tpu.dynamic_rotate %451 by %c1_i32_103 dim 1 : vector<16x128xf32>, i32 -> vector<16x128xf32>
    %cst_104 = arith.constant 0.000000e+00 : f32
    %537 = vector.broadcast %cst_104 : f32 to vector<16x128xf32>
    %538 = arith.select %18, %536, %537 : vector<16x128xi1>, vector<16x128xf32>
    %c127_i32_105 = arith.constant 127 : i32
    %539 = tpu.dynamic_rotate %451 by %c127_i32_105 dim 1 : vector<16x128xf32>, i32 -> vector<16x128xf32>
    %cst_106 = arith.constant 0.000000e+00 : f32
    %540 = vector.broadcast %cst_106 : f32 to vector<16x128xf32>
    %541 = arith.select %20, %539, %540 : vector<16x128xi1>, vector<16x128xf32>
    %c6_107 = arith.constant 6 : index
    %542 = memref.load %arg4[%c6_107] : memref<81xf32, #tpu.memory_space<smem>>
    %543 = vector.broadcast %542 : f32 to vector<16x128xf32>
    %544 = arith.mulf %543, %538 : vector<16x128xf32>
    %545 = arith.addf %527, %544 : vector<16x128xf32>
    %c33_108 = arith.constant 33 : index
    %546 = memref.load %arg4[%c33_108] : memref<81xf32, #tpu.memory_space<smem>>
    %547 = vector.broadcast %546 : f32 to vector<16x128xf32>
    %548 = arith.mulf %547, %538 : vector<16x128xf32>
    %549 = arith.addf %531, %548 : vector<16x128xf32>
    %c60_109 = arith.constant 60 : index
    %550 = memref.load %arg4[%c60_109] : memref<81xf32, #tpu.memory_space<smem>>
    %551 = vector.broadcast %550 : f32 to vector<16x128xf32>
    %552 = arith.mulf %551, %538 : vector<16x128xf32>
    %553 = arith.addf %535, %552 : vector<16x128xf32>
    %c7_110 = arith.constant 7 : index
    %554 = memref.load %arg4[%c7_110] : memref<81xf32, #tpu.memory_space<smem>>
    %555 = vector.broadcast %554 : f32 to vector<16x128xf32>
    %556 = arith.mulf %555, %451 : vector<16x128xf32>
    %557 = arith.addf %545, %556 : vector<16x128xf32>
    %c34_111 = arith.constant 34 : index
    %558 = memref.load %arg4[%c34_111] : memref<81xf32, #tpu.memory_space<smem>>
    %559 = vector.broadcast %558 : f32 to vector<16x128xf32>
    %560 = arith.mulf %559, %451 : vector<16x128xf32>
    %561 = arith.addf %549, %560 : vector<16x128xf32>
    %c61_112 = arith.constant 61 : index
    %562 = memref.load %arg4[%c61_112] : memref<81xf32, #tpu.memory_space<smem>>
    %563 = vector.broadcast %562 : f32 to vector<16x128xf32>
    %564 = arith.mulf %563, %451 : vector<16x128xf32>
    %565 = arith.addf %553, %564 : vector<16x128xf32>
    %c8_113 = arith.constant 8 : index
    %566 = memref.load %arg4[%c8_113] : memref<81xf32, #tpu.memory_space<smem>>
    %567 = vector.broadcast %566 : f32 to vector<16x128xf32>
    %568 = arith.mulf %567, %541 : vector<16x128xf32>
    %569 = arith.addf %557, %568 : vector<16x128xf32>
    %c35_114 = arith.constant 35 : index
    %570 = memref.load %arg4[%c35_114] : memref<81xf32, #tpu.memory_space<smem>>
    %571 = vector.broadcast %570 : f32 to vector<16x128xf32>
    %572 = arith.mulf %571, %541 : vector<16x128xf32>
    %573 = arith.addf %561, %572 : vector<16x128xf32>
    %c62_115 = arith.constant 62 : index
    %574 = memref.load %arg4[%c62_115] : memref<81xf32, #tpu.memory_space<smem>>
    %575 = vector.broadcast %574 : f32 to vector<16x128xf32>
    %576 = arith.mulf %575, %541 : vector<16x128xf32>
    %577 = arith.addf %565, %576 : vector<16x128xf32>
    %c1_i32_116 = arith.constant 1 : i32
    %578 = tpu.dynamic_rotate %437 by %c1_i32_116 dim 0 : vector<16x128xf32>, i32 -> vector<16x128xf32>
    %cst_117 = arith.constant 0.000000e+00 : f32
    %579 = vector.broadcast %cst_117 : f32 to vector<16x128xf32>
    %580 = arith.select %23, %578, %579 : vector<16x128xi1>, vector<16x128xf32>
    %c15_i32_118 = arith.constant 15 : i32
    %581 = tpu.dynamic_rotate %437 by %c15_i32_118 dim 0 : vector<16x128xf32>, i32 -> vector<16x128xf32>
    %cst_119 = arith.constant 0.000000e+00 : f32
    %582 = vector.broadcast %cst_119 : f32 to vector<16x128xf32>
    %583 = arith.select %25, %581, %582 : vector<16x128xi1>, vector<16x128xf32>
    %c1_i32_120 = arith.constant 1 : i32
    %584 = tpu.dynamic_rotate %580 by %c1_i32_120 dim 1 : vector<16x128xf32>, i32 -> vector<16x128xf32>
    %cst_121 = arith.constant 0.000000e+00 : f32
    %585 = vector.broadcast %cst_121 : f32 to vector<16x128xf32>
    %586 = arith.select %18, %584, %585 : vector<16x128xi1>, vector<16x128xf32>
    %c127_i32_122 = arith.constant 127 : i32
    %587 = tpu.dynamic_rotate %580 by %c127_i32_122 dim 1 : vector<16x128xf32>, i32 -> vector<16x128xf32>
    %cst_123 = arith.constant 0.000000e+00 : f32
    %588 = vector.broadcast %cst_123 : f32 to vector<16x128xf32>
    %589 = arith.select %20, %587, %588 : vector<16x128xi1>, vector<16x128xf32>
    %c9_124 = arith.constant 9 : index
    %590 = memref.load %arg4[%c9_124] : memref<81xf32, #tpu.memory_space<smem>>
    %591 = vector.broadcast %590 : f32 to vector<16x128xf32>
    %592 = arith.mulf %591, %586 : vector<16x128xf32>
    %593 = arith.addf %569, %592 : vector<16x128xf32>
    %c36_125 = arith.constant 36 : index
    %594 = memref.load %arg4[%c36_125] : memref<81xf32, #tpu.memory_space<smem>>
    %595 = vector.broadcast %594 : f32 to vector<16x128xf32>
    %596 = arith.mulf %595, %586 : vector<16x128xf32>
    %597 = arith.addf %573, %596 : vector<16x128xf32>
    %c63_126 = arith.constant 63 : index
    %598 = memref.load %arg4[%c63_126] : memref<81xf32, #tpu.memory_space<smem>>
    %599 = vector.broadcast %598 : f32 to vector<16x128xf32>
    %600 = arith.mulf %599, %586 : vector<16x128xf32>
    %601 = arith.addf %577, %600 : vector<16x128xf32>
    %c10_127 = arith.constant 10 : index
    %602 = memref.load %arg4[%c10_127] : memref<81xf32, #tpu.memory_space<smem>>
    %603 = vector.broadcast %602 : f32 to vector<16x128xf32>
    %604 = arith.mulf %603, %580 : vector<16x128xf32>
    %605 = arith.addf %593, %604 : vector<16x128xf32>
    %c37_128 = arith.constant 37 : index
    %606 = memref.load %arg4[%c37_128] : memref<81xf32, #tpu.memory_space<smem>>
    %607 = vector.broadcast %606 : f32 to vector<16x128xf32>
    %608 = arith.mulf %607, %580 : vector<16x128xf32>
    %609 = arith.addf %597, %608 : vector<16x128xf32>
    %c64_129 = arith.constant 64 : index
    %610 = memref.load %arg4[%c64_129] : memref<81xf32, #tpu.memory_space<smem>>
    %611 = vector.broadcast %610 : f32 to vector<16x128xf32>
    %612 = arith.mulf %611, %580 : vector<16x128xf32>
    %613 = arith.addf %601, %612 : vector<16x128xf32>
    %c11_130 = arith.constant 11 : index
    %614 = memref.load %arg4[%c11_130] : memref<81xf32, #tpu.memory_space<smem>>
    %615 = vector.broadcast %614 : f32 to vector<16x128xf32>
    %616 = arith.mulf %615, %589 : vector<16x128xf32>
    %617 = arith.addf %605, %616 : vector<16x128xf32>
    %c38_131 = arith.constant 38 : index
    %618 = memref.load %arg4[%c38_131] : memref<81xf32, #tpu.memory_space<smem>>
    %619 = vector.broadcast %618 : f32 to vector<16x128xf32>
    %620 = arith.mulf %619, %589 : vector<16x128xf32>
    %621 = arith.addf %609, %620 : vector<16x128xf32>
    %c65_132 = arith.constant 65 : index
    %622 = memref.load %arg4[%c65_132] : memref<81xf32, #tpu.memory_space<smem>>
    %623 = vector.broadcast %622 : f32 to vector<16x128xf32>
    %624 = arith.mulf %623, %589 : vector<16x128xf32>
    %625 = arith.addf %613, %624 : vector<16x128xf32>
    %c1_i32_133 = arith.constant 1 : i32
    %626 = tpu.dynamic_rotate %437 by %c1_i32_133 dim 1 : vector<16x128xf32>, i32 -> vector<16x128xf32>
    %cst_134 = arith.constant 0.000000e+00 : f32
    %627 = vector.broadcast %cst_134 : f32 to vector<16x128xf32>
    %628 = arith.select %18, %626, %627 : vector<16x128xi1>, vector<16x128xf32>
    %c127_i32_135 = arith.constant 127 : i32
    %629 = tpu.dynamic_rotate %437 by %c127_i32_135 dim 1 : vector<16x128xf32>, i32 -> vector<16x128xf32>
    %cst_136 = arith.constant 0.000000e+00 : f32
    %630 = vector.broadcast %cst_136 : f32 to vector<16x128xf32>
    %631 = arith.select %20, %629, %630 : vector<16x128xi1>, vector<16x128xf32>
    %c12_137 = arith.constant 12 : index
    %632 = memref.load %arg4[%c12_137] : memref<81xf32, #tpu.memory_space<smem>>
    %633 = vector.broadcast %632 : f32 to vector<16x128xf32>
    %634 = arith.mulf %633, %628 : vector<16x128xf32>
    %635 = arith.addf %617, %634 : vector<16x128xf32>
    %c39_138 = arith.constant 39 : index
    %636 = memref.load %arg4[%c39_138] : memref<81xf32, #tpu.memory_space<smem>>
    %637 = vector.broadcast %636 : f32 to vector<16x128xf32>
    %638 = arith.mulf %637, %628 : vector<16x128xf32>
    %639 = arith.addf %621, %638 : vector<16x128xf32>
    %c66_139 = arith.constant 66 : index
    %640 = memref.load %arg4[%c66_139] : memref<81xf32, #tpu.memory_space<smem>>
    %641 = vector.broadcast %640 : f32 to vector<16x128xf32>
    %642 = arith.mulf %641, %628 : vector<16x128xf32>
    %643 = arith.addf %625, %642 : vector<16x128xf32>
    %c13_140 = arith.constant 13 : index
    %644 = memref.load %arg4[%c13_140] : memref<81xf32, #tpu.memory_space<smem>>
    %645 = vector.broadcast %644 : f32 to vector<16x128xf32>
    %646 = arith.mulf %645, %437 : vector<16x128xf32>
    %647 = arith.addf %635, %646 : vector<16x128xf32>
    %c40_141 = arith.constant 40 : index
    %648 = memref.load %arg4[%c40_141] : memref<81xf32, #tpu.memory_space<smem>>
    %649 = vector.broadcast %648 : f32 to vector<16x128xf32>
    %650 = arith.mulf %649, %437 : vector<16x128xf32>
    %651 = arith.addf %639, %650 : vector<16x128xf32>
    %c67_142 = arith.constant 67 : index
    %652 = memref.load %arg4[%c67_142] : memref<81xf32, #tpu.memory_space<smem>>
    %653 = vector.broadcast %652 : f32 to vector<16x128xf32>
    %654 = arith.mulf %653, %437 : vector<16x128xf32>
    %655 = arith.addf %643, %654 : vector<16x128xf32>
    %c14_143 = arith.constant 14 : index
    %656 = memref.load %arg4[%c14_143] : memref<81xf32, #tpu.memory_space<smem>>
    %657 = vector.broadcast %656 : f32 to vector<16x128xf32>
    %658 = arith.mulf %657, %631 : vector<16x128xf32>
    %659 = arith.addf %647, %658 : vector<16x128xf32>
    %c41_144 = arith.constant 41 : index
    %660 = memref.load %arg4[%c41_144] : memref<81xf32, #tpu.memory_space<smem>>
    %661 = vector.broadcast %660 : f32 to vector<16x128xf32>
    %662 = arith.mulf %661, %631 : vector<16x128xf32>
    %663 = arith.addf %651, %662 : vector<16x128xf32>
    %c68_145 = arith.constant 68 : index
    %664 = memref.load %arg4[%c68_145] : memref<81xf32, #tpu.memory_space<smem>>
    %665 = vector.broadcast %664 : f32 to vector<16x128xf32>
    %666 = arith.mulf %665, %631 : vector<16x128xf32>
    %667 = arith.addf %655, %666 : vector<16x128xf32>
    %c1_i32_146 = arith.constant 1 : i32
    %668 = tpu.dynamic_rotate %583 by %c1_i32_146 dim 1 : vector<16x128xf32>, i32 -> vector<16x128xf32>
    %cst_147 = arith.constant 0.000000e+00 : f32
    %669 = vector.broadcast %cst_147 : f32 to vector<16x128xf32>
    %670 = arith.select %18, %668, %669 : vector<16x128xi1>, vector<16x128xf32>
    %c127_i32_148 = arith.constant 127 : i32
    %671 = tpu.dynamic_rotate %583 by %c127_i32_148 dim 1 : vector<16x128xf32>, i32 -> vector<16x128xf32>
    %cst_149 = arith.constant 0.000000e+00 : f32
    %672 = vector.broadcast %cst_149 : f32 to vector<16x128xf32>
    %673 = arith.select %20, %671, %672 : vector<16x128xi1>, vector<16x128xf32>
    %c15_150 = arith.constant 15 : index
    %674 = memref.load %arg4[%c15_150] : memref<81xf32, #tpu.memory_space<smem>>
    %675 = vector.broadcast %674 : f32 to vector<16x128xf32>
    %676 = arith.mulf %675, %670 : vector<16x128xf32>
    %677 = arith.addf %659, %676 : vector<16x128xf32>
    %c42_151 = arith.constant 42 : index
    %678 = memref.load %arg4[%c42_151] : memref<81xf32, #tpu.memory_space<smem>>
    %679 = vector.broadcast %678 : f32 to vector<16x128xf32>
    %680 = arith.mulf %679, %670 : vector<16x128xf32>
    %681 = arith.addf %663, %680 : vector<16x128xf32>
    %c69_152 = arith.constant 69 : index
    %682 = memref.load %arg4[%c69_152] : memref<81xf32, #tpu.memory_space<smem>>
    %683 = vector.broadcast %682 : f32 to vector<16x128xf32>
    %684 = arith.mulf %683, %670 : vector<16x128xf32>
    %685 = arith.addf %667, %684 : vector<16x128xf32>
    %c16_153 = arith.constant 16 : index
    %686 = memref.load %arg4[%c16_153] : memref<81xf32, #tpu.memory_space<smem>>
    %687 = vector.broadcast %686 : f32 to vector<16x128xf32>
    %688 = arith.mulf %687, %583 : vector<16x128xf32>
    %689 = arith.addf %677, %688 : vector<16x128xf32>
    %c43_154 = arith.constant 43 : index
    %690 = memref.load %arg4[%c43_154] : memref<81xf32, #tpu.memory_space<smem>>
    %691 = vector.broadcast %690 : f32 to vector<16x128xf32>
    %692 = arith.mulf %691, %583 : vector<16x128xf32>
    %693 = arith.addf %681, %692 : vector<16x128xf32>
    %c70_155 = arith.constant 70 : index
    %694 = memref.load %arg4[%c70_155] : memref<81xf32, #tpu.memory_space<smem>>
    %695 = vector.broadcast %694 : f32 to vector<16x128xf32>
    %696 = arith.mulf %695, %583 : vector<16x128xf32>
    %697 = arith.addf %685, %696 : vector<16x128xf32>
    %c17_156 = arith.constant 17 : index
    %698 = memref.load %arg4[%c17_156] : memref<81xf32, #tpu.memory_space<smem>>
    %699 = vector.broadcast %698 : f32 to vector<16x128xf32>
    %700 = arith.mulf %699, %673 : vector<16x128xf32>
    %701 = arith.addf %689, %700 : vector<16x128xf32>
    %c44_157 = arith.constant 44 : index
    %702 = memref.load %arg4[%c44_157] : memref<81xf32, #tpu.memory_space<smem>>
    %703 = vector.broadcast %702 : f32 to vector<16x128xf32>
    %704 = arith.mulf %703, %673 : vector<16x128xf32>
    %705 = arith.addf %693, %704 : vector<16x128xf32>
    %c71_158 = arith.constant 71 : index
    %706 = memref.load %arg4[%c71_158] : memref<81xf32, #tpu.memory_space<smem>>
    %707 = vector.broadcast %706 : f32 to vector<16x128xf32>
    %708 = arith.mulf %707, %673 : vector<16x128xf32>
    %709 = arith.addf %697, %708 : vector<16x128xf32>
    %c1_i32_159 = arith.constant 1 : i32
    %710 = tpu.dynamic_rotate %439 by %c1_i32_159 dim 0 : vector<16x128xf32>, i32 -> vector<16x128xf32>
    %cst_160 = arith.constant 0.000000e+00 : f32
    %711 = vector.broadcast %cst_160 : f32 to vector<16x128xf32>
    %712 = arith.select %23, %710, %711 : vector<16x128xi1>, vector<16x128xf32>
    %c15_i32_161 = arith.constant 15 : i32
    %713 = tpu.dynamic_rotate %439 by %c15_i32_161 dim 0 : vector<16x128xf32>, i32 -> vector<16x128xf32>
    %cst_162 = arith.constant 0.000000e+00 : f32
    %714 = vector.broadcast %cst_162 : f32 to vector<16x128xf32>
    %715 = arith.select %25, %713, %714 : vector<16x128xi1>, vector<16x128xf32>
    %c1_i32_163 = arith.constant 1 : i32
    %716 = tpu.dynamic_rotate %712 by %c1_i32_163 dim 1 : vector<16x128xf32>, i32 -> vector<16x128xf32>
    %cst_164 = arith.constant 0.000000e+00 : f32
    %717 = vector.broadcast %cst_164 : f32 to vector<16x128xf32>
    %718 = arith.select %18, %716, %717 : vector<16x128xi1>, vector<16x128xf32>
    %c127_i32_165 = arith.constant 127 : i32
    %719 = tpu.dynamic_rotate %712 by %c127_i32_165 dim 1 : vector<16x128xf32>, i32 -> vector<16x128xf32>
    %cst_166 = arith.constant 0.000000e+00 : f32
    %720 = vector.broadcast %cst_166 : f32 to vector<16x128xf32>
    %721 = arith.select %20, %719, %720 : vector<16x128xi1>, vector<16x128xf32>
    %c18_167 = arith.constant 18 : index
    %722 = memref.load %arg4[%c18_167] : memref<81xf32, #tpu.memory_space<smem>>
    %723 = vector.broadcast %722 : f32 to vector<16x128xf32>
    %724 = arith.mulf %723, %718 : vector<16x128xf32>
    %725 = arith.addf %701, %724 : vector<16x128xf32>
    %c45_168 = arith.constant 45 : index
    %726 = memref.load %arg4[%c45_168] : memref<81xf32, #tpu.memory_space<smem>>
    %727 = vector.broadcast %726 : f32 to vector<16x128xf32>
    %728 = arith.mulf %727, %718 : vector<16x128xf32>
    %729 = arith.addf %705, %728 : vector<16x128xf32>
    %c72_169 = arith.constant 72 : index
    %730 = memref.load %arg4[%c72_169] : memref<81xf32, #tpu.memory_space<smem>>
    %731 = vector.broadcast %730 : f32 to vector<16x128xf32>
    %732 = arith.mulf %731, %718 : vector<16x128xf32>
    %733 = arith.addf %709, %732 : vector<16x128xf32>
    %c19_170 = arith.constant 19 : index
    %734 = memref.load %arg4[%c19_170] : memref<81xf32, #tpu.memory_space<smem>>
    %735 = vector.broadcast %734 : f32 to vector<16x128xf32>
    %736 = arith.mulf %735, %712 : vector<16x128xf32>
    %737 = arith.addf %725, %736 : vector<16x128xf32>
    %c46_171 = arith.constant 46 : index
    %738 = memref.load %arg4[%c46_171] : memref<81xf32, #tpu.memory_space<smem>>
    %739 = vector.broadcast %738 : f32 to vector<16x128xf32>
    %740 = arith.mulf %739, %712 : vector<16x128xf32>
    %741 = arith.addf %729, %740 : vector<16x128xf32>
    %c73_172 = arith.constant 73 : index
    %742 = memref.load %arg4[%c73_172] : memref<81xf32, #tpu.memory_space<smem>>
    %743 = vector.broadcast %742 : f32 to vector<16x128xf32>
    %744 = arith.mulf %743, %712 : vector<16x128xf32>
    %745 = arith.addf %733, %744 : vector<16x128xf32>
    %c20_173 = arith.constant 20 : index
    %746 = memref.load %arg4[%c20_173] : memref<81xf32, #tpu.memory_space<smem>>
    %747 = vector.broadcast %746 : f32 to vector<16x128xf32>
    %748 = arith.mulf %747, %721 : vector<16x128xf32>
    %749 = arith.addf %737, %748 : vector<16x128xf32>
    %c47_174 = arith.constant 47 : index
    %750 = memref.load %arg4[%c47_174] : memref<81xf32, #tpu.memory_space<smem>>
    %751 = vector.broadcast %750 : f32 to vector<16x128xf32>
    %752 = arith.mulf %751, %721 : vector<16x128xf32>
    %753 = arith.addf %741, %752 : vector<16x128xf32>
    %c74_175 = arith.constant 74 : index
    %754 = memref.load %arg4[%c74_175] : memref<81xf32, #tpu.memory_space<smem>>
    %755 = vector.broadcast %754 : f32 to vector<16x128xf32>
    %756 = arith.mulf %755, %721 : vector<16x128xf32>
    %757 = arith.addf %745, %756 : vector<16x128xf32>
    %c1_i32_176 = arith.constant 1 : i32
    %758 = tpu.dynamic_rotate %439 by %c1_i32_176 dim 1 : vector<16x128xf32>, i32 -> vector<16x128xf32>
    %cst_177 = arith.constant 0.000000e+00 : f32
    %759 = vector.broadcast %cst_177 : f32 to vector<16x128xf32>
    %760 = arith.select %18, %758, %759 : vector<16x128xi1>, vector<16x128xf32>
    %c127_i32_178 = arith.constant 127 : i32
    %761 = tpu.dynamic_rotate %439 by %c127_i32_178 dim 1 : vector<16x128xf32>, i32 -> vector<16x128xf32>
    %cst_179 = arith.constant 0.000000e+00 : f32
    %762 = vector.broadcast %cst_179 : f32 to vector<16x128xf32>
    %763 = arith.select %20, %761, %762 : vector<16x128xi1>, vector<16x128xf32>
    %c21_180 = arith.constant 21 : index
    %764 = memref.load %arg4[%c21_180] : memref<81xf32, #tpu.memory_space<smem>>
    %765 = vector.broadcast %764 : f32 to vector<16x128xf32>
    %766 = arith.mulf %765, %760 : vector<16x128xf32>
    %767 = arith.addf %749, %766 : vector<16x128xf32>
    %c48_181 = arith.constant 48 : index
    %768 = memref.load %arg4[%c48_181] : memref<81xf32, #tpu.memory_space<smem>>
    %769 = vector.broadcast %768 : f32 to vector<16x128xf32>
    %770 = arith.mulf %769, %760 : vector<16x128xf32>
    %771 = arith.addf %753, %770 : vector<16x128xf32>
    %c75_182 = arith.constant 75 : index
    %772 = memref.load %arg4[%c75_182] : memref<81xf32, #tpu.memory_space<smem>>
    %773 = vector.broadcast %772 : f32 to vector<16x128xf32>
    %774 = arith.mulf %773, %760 : vector<16x128xf32>
    %775 = arith.addf %757, %774 : vector<16x128xf32>
    %c22_183 = arith.constant 22 : index
    %776 = memref.load %arg4[%c22_183] : memref<81xf32, #tpu.memory_space<smem>>
    %777 = vector.broadcast %776 : f32 to vector<16x128xf32>
    %778 = arith.mulf %777, %439 : vector<16x128xf32>
    %779 = arith.addf %767, %778 : vector<16x128xf32>
    %c49_184 = arith.constant 49 : index
    %780 = memref.load %arg4[%c49_184] : memref<81xf32, #tpu.memory_space<smem>>
    %781 = vector.broadcast %780 : f32 to vector<16x128xf32>
    %782 = arith.mulf %781, %439 : vector<16x128xf32>
    %783 = arith.addf %771, %782 : vector<16x128xf32>
    %c76_185 = arith.constant 76 : index
    %784 = memref.load %arg4[%c76_185] : memref<81xf32, #tpu.memory_space<smem>>
    %785 = vector.broadcast %784 : f32 to vector<16x128xf32>
    %786 = arith.mulf %785, %439 : vector<16x128xf32>
    %787 = arith.addf %775, %786 : vector<16x128xf32>
    %c23_186 = arith.constant 23 : index
    %788 = memref.load %arg4[%c23_186] : memref<81xf32, #tpu.memory_space<smem>>
    %789 = vector.broadcast %788 : f32 to vector<16x128xf32>
    %790 = arith.mulf %789, %763 : vector<16x128xf32>
    %791 = arith.addf %779, %790 : vector<16x128xf32>
    %c50_187 = arith.constant 50 : index
    %792 = memref.load %arg4[%c50_187] : memref<81xf32, #tpu.memory_space<smem>>
    %793 = vector.broadcast %792 : f32 to vector<16x128xf32>
    %794 = arith.mulf %793, %763 : vector<16x128xf32>
    %795 = arith.addf %783, %794 : vector<16x128xf32>
    %c77_188 = arith.constant 77 : index
    %796 = memref.load %arg4[%c77_188] : memref<81xf32, #tpu.memory_space<smem>>
    %797 = vector.broadcast %796 : f32 to vector<16x128xf32>
    %798 = arith.mulf %797, %763 : vector<16x128xf32>
    %799 = arith.addf %787, %798 : vector<16x128xf32>
    %c1_i32_189 = arith.constant 1 : i32
    %800 = tpu.dynamic_rotate %715 by %c1_i32_189 dim 1 : vector<16x128xf32>, i32 -> vector<16x128xf32>
    %cst_190 = arith.constant 0.000000e+00 : f32
    %801 = vector.broadcast %cst_190 : f32 to vector<16x128xf32>
    %802 = arith.select %18, %800, %801 : vector<16x128xi1>, vector<16x128xf32>
    %c127_i32_191 = arith.constant 127 : i32
    %803 = tpu.dynamic_rotate %715 by %c127_i32_191 dim 1 : vector<16x128xf32>, i32 -> vector<16x128xf32>
    %cst_192 = arith.constant 0.000000e+00 : f32
    %804 = vector.broadcast %cst_192 : f32 to vector<16x128xf32>
    %805 = arith.select %20, %803, %804 : vector<16x128xi1>, vector<16x128xf32>
    %c24_193 = arith.constant 24 : index
    %806 = memref.load %arg4[%c24_193] : memref<81xf32, #tpu.memory_space<smem>>
    %807 = vector.broadcast %806 : f32 to vector<16x128xf32>
    %808 = arith.mulf %807, %802 : vector<16x128xf32>
    %809 = arith.addf %791, %808 : vector<16x128xf32>
    %c51_194 = arith.constant 51 : index
    %810 = memref.load %arg4[%c51_194] : memref<81xf32, #tpu.memory_space<smem>>
    %811 = vector.broadcast %810 : f32 to vector<16x128xf32>
    %812 = arith.mulf %811, %802 : vector<16x128xf32>
    %813 = arith.addf %795, %812 : vector<16x128xf32>
    %c78_195 = arith.constant 78 : index
    %814 = memref.load %arg4[%c78_195] : memref<81xf32, #tpu.memory_space<smem>>
    %815 = vector.broadcast %814 : f32 to vector<16x128xf32>
    %816 = arith.mulf %815, %802 : vector<16x128xf32>
    %817 = arith.addf %799, %816 : vector<16x128xf32>
    %c25_196 = arith.constant 25 : index
    %818 = memref.load %arg4[%c25_196] : memref<81xf32, #tpu.memory_space<smem>>
    %819 = vector.broadcast %818 : f32 to vector<16x128xf32>
    %820 = arith.mulf %819, %715 : vector<16x128xf32>
    %821 = arith.addf %809, %820 : vector<16x128xf32>
    %c52_197 = arith.constant 52 : index
    %822 = memref.load %arg4[%c52_197] : memref<81xf32, #tpu.memory_space<smem>>
    %823 = vector.broadcast %822 : f32 to vector<16x128xf32>
    %824 = arith.mulf %823, %715 : vector<16x128xf32>
    %825 = arith.addf %813, %824 : vector<16x128xf32>
    %c79_198 = arith.constant 79 : index
    %826 = memref.load %arg4[%c79_198] : memref<81xf32, #tpu.memory_space<smem>>
    %827 = vector.broadcast %826 : f32 to vector<16x128xf32>
    %828 = arith.mulf %827, %715 : vector<16x128xf32>
    %829 = arith.addf %817, %828 : vector<16x128xf32>
    %c26_199 = arith.constant 26 : index
    %830 = memref.load %arg4[%c26_199] : memref<81xf32, #tpu.memory_space<smem>>
    %831 = vector.broadcast %830 : f32 to vector<16x128xf32>
    %832 = arith.mulf %831, %805 : vector<16x128xf32>
    %833 = arith.addf %821, %832 : vector<16x128xf32>
    %c53_200 = arith.constant 53 : index
    %834 = memref.load %arg4[%c53_200] : memref<81xf32, #tpu.memory_space<smem>>
    %835 = vector.broadcast %834 : f32 to vector<16x128xf32>
    %836 = arith.mulf %835, %805 : vector<16x128xf32>
    %837 = arith.addf %825, %836 : vector<16x128xf32>
    %c80_201 = arith.constant 80 : index
    %838 = memref.load %arg4[%c80_201] : memref<81xf32, #tpu.memory_space<smem>>
    %839 = vector.broadcast %838 : f32 to vector<16x128xf32>
    %840 = arith.mulf %839, %805 : vector<16x128xf32>
    %841 = arith.addf %829, %840 : vector<16x128xf32>
    %cst_202 = arith.constant 0.000000e+00 : f32
    %842 = vector.broadcast %cst_202 : f32 to vector<16x128xf32>
    %843 = arith.maximumf %833, %842 : vector<16x128xf32>
    %844 = arith.addf %843, %27 : vector<16x128xf32>
    %c0_203 = arith.constant 0 : index
    %c0_204 = arith.constant 0 : index
    %c0_205 = arith.constant 0 : index
    %c0_206 = arith.constant 0 : index
    %845 = vector.load %arg6[%c0_203, %c0_204, %c0_205, %c0_206] : memref<1x3x16x128xf32, #tpu.memory_space<vmem>>, vector<1x1x16x128xf32>
    %846 = vector.shape_cast %845 : vector<1x1x16x128xf32> to vector<16x128xf32>
    %847 = vector.shape_cast %844 : vector<16x128xf32> to vector<1x1x16x128xf32>
    tpu.vector_store %arg6[%c0_203, %c0_204, %c0_205, %c0_206], %847 {strides = array<i32>} : memref<1x3x16x128xf32, #tpu.memory_space<vmem>>, vector<1x1x16x128xf32>,
    %cst_207 = arith.constant 0.000000e+00 : f32
    %848 = vector.broadcast %cst_207 : f32 to vector<16x128xf32>
    %849 = arith.maximumf %837, %848 : vector<16x128xf32>
    %850 = arith.addf %849, %29 : vector<16x128xf32>
    %c0_208 = arith.constant 0 : index
    %c1_209 = arith.constant 1 : index
    %c0_210 = arith.constant 0 : index
    %c0_211 = arith.constant 0 : index
    %851 = vector.load %arg6[%c0_208, %c1_209, %c0_210, %c0_211] : memref<1x3x16x128xf32, #tpu.memory_space<vmem>>, vector<1x1x16x128xf32>
    %852 = vector.shape_cast %851 : vector<1x1x16x128xf32> to vector<16x128xf32>
    %853 = vector.shape_cast %850 : vector<16x128xf32> to vector<1x1x16x128xf32>
    tpu.vector_store %arg6[%c0_208, %c1_209, %c0_210, %c0_211], %853 {strides = array<i32>} : memref<1x3x16x128xf32, #tpu.memory_space<vmem>>, vector<1x1x16x128xf32>,
    %cst_212 = arith.constant 0.000000e+00 : f32
    %854 = vector.broadcast %cst_212 : f32 to vector<16x128xf32>
    %855 = arith.maximumf %841, %854 : vector<16x128xf32>
    %856 = arith.addf %855, %31 : vector<16x128xf32>
    %c0_213 = arith.constant 0 : index
    %c2_214 = arith.constant 2 : index
    %c0_215 = arith.constant 0 : index
    %c0_216 = arith.constant 0 : index
    %857 = vector.load %arg6[%c0_213, %c2_214, %c0_215, %c0_216] : memref<1x3x16x128xf32, #tpu.memory_space<vmem>>, vector<1x1x16x128xf32>
    %858 = vector.shape_cast %857 : vector<1x1x16x128xf32> to vector<16x128xf32>
    %859 = vector.shape_cast %856 : vector<16x128xf32> to vector<1x1x16x128xf32>
    tpu.vector_store %arg6[%c0_213, %c2_214, %c0_215, %c0_216], %859 {strides = array<i32>} : memref<1x3x16x128xf32, #tpu.memory_space<vmem>>, vector<1x1x16x128xf32>,
    return
  }
  func.func @transform_0(%arg0: i32) -> (i32, i32, i32, i32) {
    %c0_i32 = arith.constant 0 : i32
    %c0_i32_0 = arith.constant 0 : i32
    %c0_i32_1 = arith.constant 0 : i32
    %c0_i32_2 = arith.constant 0 : i32
    return %arg0, %c0_i32, %c0_i32_0, %c0_i32_1 : i32, i32, i32, i32
  }
  func.func @transform_1(%arg0: i32) -> i32 {
    %c0_i32 = arith.constant 0 : i32
    %c0_i32_0 = arith.constant 0 : i32
    return %c0_i32 : i32
  }
  func.func @transform_2(%arg0: i32) -> i32 {
    %c0_i32 = arith.constant 0 : i32
    %c0_i32_0 = arith.constant 0 : i32
    return %c0_i32 : i32
  }
  func.func @transform_3(%arg0: i32) -> i32 {
    %c0_i32 = arith.constant 0 : i32
    %c0_i32_0 = arith.constant 0 : i32
    return %c0_i32 : i32
  }
  func.func @transform_4(%arg0: i32) -> i32 {
    %c0_i32 = arith.constant 0 : i32
    %c0_i32_0 = arith.constant 0 : i32
    return %c0_i32 : i32
  }
  func.func @transform_5(%arg0: i32) -> (i32, i32, i32, i32) {
    %c0_i32 = arith.constant 0 : i32
    %c0_i32_0 = arith.constant 0 : i32
    %c0_i32_1 = arith.constant 0 : i32
    %c0_i32_2 = arith.constant 0 : i32
    return %arg0, %c0_i32, %c0_i32_0, %c0_i32_1 : i32, i32, i32, i32
  }
}

</mosaic_0001>

<llo_original>
// kernel: tpu_custom_call.1
$region0: #{tpu_custom_call.1}
  #allocation0 [shape = 'u32[]', space=smem, size = 0x4, offset = 0x4, fixed_abs, tag = 'smem constant byte address 0x4 - core index']
  #allocation1 [shape = 'u32[144,128]{1,0:T(1,128)}', space=vmem, size = 0x12000, scoped, tag = 'internal scratch']
  %s0 = inlined_call_operand.hbm [shape: f32[2,3,16,128], index: 0, kind: input, shape index: {}]
  %s1 = inlined_call_operand.vmem [shape: f32[81], index: 1, kind: input, shape index: {}]
  %s2 = inlined_call_operand.vmem [shape: f32[3], index: 2, kind: input, shape index: {}]
  %s3 = inlined_call_operand.vmem [shape: f32[81], index: 3, kind: input, shape index: {}]
  %s4 = inlined_call_operand.vmem [shape: f32[3], index: 4, kind: input, shape index: {}]
  %s5 = inlined_call_operand.hbm [shape: f32[2,3,16,128], index: 5, kind: output, shape index: {}]
  %s6 = sld [smem:[#allocation0]]
  $region73: #{tpu_custom_call.1} parent=0
    _
  %s8 = ssub.s32 1, %s6
  %s9 = scalar_select 0, %s8, %s6
  $region1: #{tpu_custom_call.1} parent=0
    #allocation2 [shape = 'u8[49152]{0}', space=vmem, size = 0xc000, scoped, tag = 'input window, operand 0']
    #allocation3 [shape = 's32[2]{0}', space=sflag, size = 0x8, scoped, tag = 'scoped memory for tpu_custom_call.1']
    #allocation4 [shape = 's32[2]{0}', space=sflag, size = 0x8, scoped, tag = 'scoped memory for tpu_custom_call.1']
    #allocation5 [shape = 's32[2]{0}', space=sflag, size = 0x8, scoped, tag = 'scoped memory for tpu_custom_call.1']
    #allocation6 [shape = 'u8[512]{0}', space=smem, size = 0x200, scoped, tag = 'input window, operand 1, single buffered']
    #allocation7 [shape = 'u8[512]{0}', space=smem, size = 0x200, scoped, tag = 'input window, operand 2, single buffered']
    #allocation8 [shape = 's32[1]{0}', space=sflag, size = 0x4, scoped, tag = 'scoped memory for tpu_custom_call.1']
    #allocation9 [shape = 'u8[512]{0}', space=smem, size = 0x200, scoped, tag = 'input window, operand 3, single buffered']
    #allocation10 [shape = 'u8[512]{0}', space=smem, size = 0x200, scoped, tag = 'input window, operand 4, single buffered']
    #allocation11 [shape = 's32[1]{0}', space=sflag, size = 0x4, scoped, tag = 'scoped memory for tpu_custom_call.1']
    #allocation12 [shape = 'u8[49152]{0}', space=vmem, size = 0xc000, scoped, tag = 'output window, operand 0']
    %10 = vsyncpa [#allocation3], 0
    %s11 = scalar_lea.sflag [#allocation3], 1
    %12 = vsyncpa %s11, 0
    %13 = vsyncpa [#allocation5], 0
    %14 = vsyncpa [#allocation8], 0
    %15 = vsyncpa [#allocation11], 0
    %16 = vsyncpa [#allocation4], 0
    %s17 = scalar_lea.sflag [#allocation4], 1
    %18 = vsyncpa %s17, 0
    loop: start=0, step=1, limit=4
    $region2: #{tpu_custom_call.1} parent=1 // loop_pre_header
      _
    $region3: #{tpu_custom_call.1} parent=1 // loop_header
      %s20 = sphi 0, %s24
      %p21 = scmp.ge.s32.totalorder %s20, 4
      %s30 = sphi 0, %s32
      %s33 = sphi 0, %s30
      %s34 = sphi 0, %s33
      %s50 = sphi 0, %s34
      %s54 = sphi 0, %s54
      %s56 = sphi 0, %s54
      %s57 = sphi 0, %s56
      %s71 = sphi 0, %s57
      %s75 = sphi 0, %s75
      %s77 = sphi 0, %s75
      %s78 = sphi 0, %s77
      %s92 = sphi 0, %s78
      %s96 = sphi 0, %s96
      %s98 = sphi 0, %s96
      %s99 = sphi 0, %s98
      %s113 = sphi 0, %s99
      %s117 = sphi 0, %s117
      %s119 = sphi 0, %s117
      %s120 = sphi 0, %s119
      %s134 = sphi 0, %s120
      %s140 = sphi 0, %s142
      %s143 = sphi 0, %s140
      %s144 = sphi 0, %s143
      %s160 = sphi 0, %s144
    $region4: #{tpu_custom_call.1} parent=1 // loop_header_branch
      %23 = sbr.rel (%p21) target = $region8
    $region5: #{tpu_custom_call.1} parent=1 // loop_body
      %s25 = ssub.s32 %s20, 1
      %s26 = ssub.s32 %s20, 2
      %s27 = sadd.s32 %s20, 1
      %s28 = ssub.s32 %s20, %s27
      %p29 = scmp.eq.s32.totalorder %s28, 0
      %s31 = sadd.s32 %s30, 1
      %s32 = scalar_select %p29, %s30, %s31
      %p35 = pneg %p29
      %p36 = scmp.eq.s32.totalorder %s20, 1
      %p37 = por %p35, %p36
      %p38 = scmp.ne.s32.totalorder %s30, %s33
      %p39 = scmp.eq.s32.totalorder %s20, 0
      %p40 = por %p38, %p39
      %p41 = scmp.ne.s32.totalorder %s30, %s33
      %p42 = scmp.eq.s32.totalorder %s25, 1
      %p43 = por %p41, %p42
      %p44 = scmp.ne.s32.totalorder %s33, %s34
      %p45 = scmp.eq.s32.totalorder %s25, 0
      %p46 = por %p44, %p45
      %p47 = scmp.ne.s32.totalorder %s33, %s34
      %p48 = scmp.eq.s32.totalorder %s26, 1
      %p49 = por %p47, %p48
      %p51 = scmp.ne.s32.totalorder %s34, %s50
      %p52 = scmp.eq.s32.totalorder %s26, 0
      %p53 = por %p51, %p52
      %s55 = sadd.s32 %s54, 1
      %p58 = scmp.eq.s32.totalorder %s20, 1
      %p59 = scmp.ne.s32.totalorder %s54, %s56
      %p60 = scmp.eq.s32.totalorder %s20, 0
      %p61 = por %p59, %p60
      %p62 = scmp.ne.s32.totalorder %s54, %s56
      %p63 = scmp.eq.s32.totalorder %s25, 1
      %p64 = por %p62, %p63
      %p65 = scmp.ne.s32.totalorder %s56, %s57
      %p66 = scmp.eq.s32.totalorder %s25, 0
      %p67 = por %p65, %p66
      %p68 = scmp.ne.s32.totalorder %s56, %s57
      %p69 = scmp.eq.s32.totalorder %s26, 1
      %p70 = por %p68, %p69
      %p72 = scmp.ne.s32.totalorder %s57, %s71
      %p73 = scmp.eq.s32.totalorder %s26, 0
      %p74 = por %p72, %p73
      %s76 = sadd.s32 %s75, 1
      %p79 = scmp.eq.s32.totalorder %s20, 1
      %p80 = scmp.ne.s32.totalorder %s75, %s77
      %p81 = scmp.eq.s32.totalorder %s20, 0
      %p82 = por %p80, %p81
      %p83 = scmp.ne.s32.totalorder %s75, %s77
      %p84 = scmp.eq.s32.totalorder %s25, 1
      %p85 = por %p83, %p84
      %p86 = scmp.ne.s32.totalorder %s77, %s78
      %p87 = scmp.eq.s32.totalorder %s25, 0
      %p88 = por %p86, %p87
      %p89 = scmp.ne.s32.totalorder %s77, %s78
      %p90 = scmp.eq.s32.totalorder %s26, 1
      %p91 = por %p89, %p90
      %p93 = scmp.ne.s32.totalorder %s78, %s92
      %p94 = scmp.eq.s32.totalorder %s26, 0
      %p95 = por %p93, %p94
      %s97 = sadd.s32 %s96, 1
      %p100 = scmp.eq.s32.totalorder %s20, 1
      %p101 = scmp.ne.s32.totalorder %s96, %s98
      %p102 = scmp.eq.s32.totalorder %s20, 0
      %p103 = por %p101, %p102
      %p104 = scmp.ne.s32.totalorder %s96, %s98
      %p105 = scmp.eq.s32.totalorder %s25, 1
      %p106 = por %p104, %p105
      %p107 = scmp.ne.s32.totalorder %s98, %s99
      %p108 = scmp.eq.s32.totalorder %s25, 0
      %p109 = por %p107, %p108
      %p110 = scmp.ne.s32.totalorder %s98, %s99
      %p111 = scmp.eq.s32.totalorder %s26, 1
      %p112 = por %p110, %p111
      %p114 = scmp.ne.s32.totalorder %s99, %s113
      %p115 = scmp.eq.s32.totalorder %s26, 0
      %p116 = por %p114, %p115
      %s118 = sadd.s32 %s117, 1
      %p121 = scmp.eq.s32.totalorder %s20, 1
      %p122 = scmp.ne.s32.totalorder %s117, %s119
      %p123 = scmp.eq.s32.totalorder %s20, 0
      %p124 = por %p122, %p123
      %p125 = scmp.ne.s32.totalorder %s117, %s119
      %p126 = scmp.eq.s32.totalorder %s25, 1
      %p127 = por %p125, %p126
      %p128 = scmp.ne.s32.totalorder %s119, %s120
      %p129 = scmp.eq.s32.totalorder %s25, 0
      %p130 = por %p128, %p129
      %p131 = scmp.ne.s32.totalorder %s119, %s120
      %p132 = scmp.eq.s32.totalorder %s26, 1
      %p133 = por %p131, %p132
      %p135 = scmp.ne.s32.totalorder %s120, %s134
      %p136 = scmp.eq.s32.totalorder %s26, 0
      %p137 = por %p135, %p136
      %s138 = ssub.s32 %s20, %s27
      %p139 = scmp.eq.s32.totalorder %s138, 0
      %s141 = sadd.s32 %s140, 1
      %s142 = scalar_select %p139, %s140, %s141
      %p145 = pneg %p139
      %p146 = scmp.eq.s32.totalorder %s20, 1
      %p147 = por %p145, %p146
      %p148 = scmp.ne.s32.totalorder %s140, %s143
      %p149 = scmp.eq.s32.totalorder %s20, 0
      %p150 = por %p148, %p149
      %p151 = scmp.ne.s32.totalorder %s140, %s143
      %p152 = scmp.eq.s32.totalorder %s25, 1
      %p153 = por %p151, %p152
      %p154 = scmp.ne.s32.totalorder %s143, %s144
      %p155 = scmp.eq.s32.totalorder %s25, 0
      %p156 = por %p154, %p155
      %p157 = scmp.ne.s32.totalorder %s143, %s144
      %p158 = scmp.eq.s32.totalorder %s26, 1
      %p159 = por %p157, %p158
      %p161 = scmp.ne.s32.totalorder %s144, %s160
      %p162 = scmp.eq.s32.totalorder %s26, 0
      %p163 = por %p161, %p162
      %p164 = scmp.le.s32.totalorder 1, %s20
      %p165 = scmp.lt.s32.totalorder %s20, 3
      %p166 = pnand %p164, %p165
      %p167 = pneg %p166
      // Predicated region
      $region9: #{tpu_custom_call.1} parent=5 // pred_check
        _
      $region10: #{tpu_custom_call.1} parent=5 // pred_check_branch
        %169 = sbr.rel (%p166) target = $region12
      $region11: #{tpu_custom_call.1} parent=5 // pred_region
        %s170 = ssub.s32 %s20, 1
        // Predicated region
        $region13: #{tpu_custom_call.1} parent=11 // pred_check
          %p171 = pneg %p67
        $region14: #{tpu_custom_call.1} parent=11 // pred_check_branch
          %173 = sbr.rel (%p171) target = $region16
        $region15: #{tpu_custom_call.1} parent=11 // pred_region
          %s175 = ssub.s32 16, 16
          %176 = vsyncadd [#allocation5], %s175
          %s178 = sshll.u32 %s1, 4
          %s179 = int_to_ptr.vmem [resolvable:$true] %s178
          %181 = dma.vmem_to_smem %s179, 16, [#allocation6], [#allocation5]
        $region16: #{tpu_custom_call.1} parent=11 // pred_fallthru
          _
        // Predicated region
        $region17: #{tpu_custom_call.1} parent=11 // pred_check
          %p182 = pneg %p88
        $region18: #{tpu_custom_call.1} parent=11 // pred_check_branch
          %184 = sbr.rel (%p182) target = $region20
        $region19: #{tpu_custom_call.1} parent=11 // pred_region
          %s186 = ssub.s32 16, 16
          %187 = vsyncadd [#allocation8], %s186
          %s189 = sshll.u32 %s2, 4
          %s190 = int_to_ptr.vmem [resolvable:$true] %s189
          %192 = dma.vmem_to_smem %s190, 16, [#allocation7], [#allocation8]
        $region20: #{tpu_custom_call.1} parent=11 // pred_fallthru
          _
        // Predicated region
        $region21: #{tpu_custom_call.1} parent=11 // pred_check
          %p193 = pneg %p109
        $region22: #{tpu_custom_call.1} parent=11 // pred_check_branch
          %195 = sbr.rel (%p193) target = $region24
        $region23: #{tpu_custom_call.1} parent=11 // pred_region
          %s197 = ssub.s32 16, 16
          %198 = vsyncadd [#allocation8], %s197
          %s200 = sshll.u32 %s3, 4
          %s201 = int_to_ptr.vmem [resolvable:$true] %s200
          %203 = dma.vmem_to_smem %s201, 16, [#allocation9], [#allocation8]
        $region24: #{tpu_custom_call.1} parent=11 // pred_fallthru
          _
        // Predicated region
        $region25: #{tpu_custom_call.1} parent=11 // pred_check
          %p204 = pneg %p130
        $region26: #{tpu_custom_call.1} parent=11 // pred_check_branch
          %206 = sbr.rel (%p204) target = $region28
        $region27: #{tpu_custom_call.1} parent=11 // pred_region
          %s208 = ssub.s32 16, 16
          %209 = vsyncadd [#allocation11], %s208
          %s211 = sshll.u32 %s4, 4
          %s212 = int_to_ptr.vmem [resolvable:$true] %s211
          %214 = dma.vmem_to_smem %s212, 16, [#allocation10], [#allocation11]
        $region28: #{tpu_custom_call.1} parent=11 // pred_fallthru
          _
      $region12: #{tpu_custom_call.1} parent=5 // pred_fallthru
        _
      %p215 = scmp.lt.s32.totalorder %s20, 2
      // Predicated region
      $region29: #{tpu_custom_call.1} parent=5 // pred_check
        %p216 = pneg %p215
      $region30: #{tpu_custom_call.1} parent=5 // pred_check_branch
        %218 = sbr.rel (%p216) target = $region32
      $region31: #{tpu_custom_call.1} parent=5 // pred_region
        // Predicated region
        $region33: #{tpu_custom_call.1} parent=31 // pred_check
          %p219 = pneg %p40
        $region34: #{tpu_custom_call.1} parent=31 // pred_check_branch
          %221 = sbr.rel (%p219) target = $region36
        $region35: #{tpu_custom_call.1} parent=31 // pred_region
          %s222 = sand.u32 %s30, 1
          %s223 = scalar_lea.sflag [#allocation3], %s222
          %s224 = sand.u32 %s30, 1
          %s225 = smul.addr %s224, 48
          %s226 = scalar_lea.vmem [#allocation2], %s225
          %s228 = ssub.s32 768, 768
          %229 = vsyncadd %s223, %s228
          %s230 = smul.addr %s20, 6
          %s231 = smul.addr %s230, 128
          %s232 = scalar_lea.hbm %s0, %s231
          %s233 = sshll.u32 %s226, 4
          %s234 = int_to_ptr.vmem [resolvable:$true] %s233
          %239 = dma.hbm_to_vmem [thread:$0]  %s232, 768, %s234, %s223, 128, 128, 8
        $region36: #{tpu_custom_call.1} parent=31 // pred_fallthru
          _
      $region32: #{tpu_custom_call.1} parent=5 // pred_fallthru
        _
      %p240 = scmp.le.s32.totalorder 1, %s20
      %p241 = scmp.lt.s32.totalorder %s20, 3
      %p242 = pnand %p240, %p241
      %p243 = pneg %p242
      // Predicated region
      $region37: #{tpu_custom_call.1} parent=5 // pred_check
        _
      $region38: #{tpu_custom_call.1} parent=5 // pred_check_branch
        %245 = sbr.rel (%p242) target = $region40
      $region39: #{tpu_custom_call.1} parent=5 // pred_region
        %s246 = ssub.s32 %s20, 1
        %s247 = sand.u32 %s33, 1
        %s248 = scalar_lea.sflag [#allocation3], %s247
        %s249 = sand.u32 %s33, 1
        %s250 = smul.addr %s249, 48
        %s251 = scalar_lea.vmem [#allocation2], %s250
        // Predicated region
        $region41: #{tpu_custom_call.1} parent=39 // pred_check
          %p252 = pneg %p46
        $region42: #{tpu_custom_call.1} parent=39 // pred_check_branch
          %254 = sbr.rel (%p252) target = $region44
        $region43: #{tpu_custom_call.1} parent=39 // pred_region
          %255 = dma.done %s248, 768
        $region44: #{tpu_custom_call.1} parent=39 // pred_fallthru
          _
        // Predicated region
        $region45: #{tpu_custom_call.1} parent=39 // pred_check
          %p256 = pneg %p67
        $region46: #{tpu_custom_call.1} parent=39 // pred_check_branch
          %258 = sbr.rel (%p256) target = $region48
        $region47: #{tpu_custom_call.1} parent=39 // pred_region
          %259 = dma.done [#allocation5], 16
        $region48: #{tpu_custom_call.1} parent=39 // pred_fallthru
          _
        // Predicated region
        $region49: #{tpu_custom_call.1} parent=39 // pred_check
          %p260 = pneg %p88
        $region50: #{tpu_custom_call.1} parent=39 // pred_check_branch
          %262 = sbr.rel (%p260) target = $region52
        $region51: #{tpu_custom_call.1} parent=39 // pred_region
          %263 = dma.done [#allocation8], 16
        $region52: #{tpu_custom_call.1} parent=39 // pred_fallthru
          _
        // Predicated region
        $region53: #{tpu_custom_call.1} parent=39 // pred_check
          %p264 = pneg %p109
        $region54: #{tpu_custom_call.1} parent=39 // pred_check_branch
          %266 = sbr.rel (%p264) target = $region56
        $region55: #{tpu_custom_call.1} parent=39 // pred_region
          %267 = dma.done [#allocation8], 16
        $region56: #{tpu_custom_call.1} parent=39 // pred_fallthru
          _
        // Predicated region
        $region57: #{tpu_custom_call.1} parent=39 // pred_check
          %p268 = pneg %p130
        $region58: #{tpu_custom_call.1} parent=39 // pred_check_branch
          %270 = sbr.rel (%p268) target = $region60
        $region59: #{tpu_custom_call.1} parent=39 // pred_region
          %271 = dma.done [#allocation11], 16
        $region60: #{tpu_custom_call.1} parent=39 // pred_fallthru
          _
        %272 = sfence
        %s273 = sand.u32 %s33, 1
        %s274 = scalar_lea.sflag [#allocation3], %s273
        %s275 = sand.u32 %s33, 1
        %s276 = smul.addr %s275, 48
        %s277 = scalar_lea.vmem [#allocation2], %s276
        %p278 = pneg %p46
        %p279 = pneg %p43
        %p280 = pneg %p67
        %p281 = pneg %p64
        %p282 = pneg %p88
        %p283 = pneg %p85
        %p284 = pneg %p109
        %p285 = pneg %p106
        %p286 = pneg %p130
        %p287 = pneg %p127
        %p288 = pneg %p156
        %p289 = pneg %p153
        %s290 = sand.u32 %s143, 1
        %s291 = scalar_lea.sflag [#allocation4], %s290
        %s292 = sand.u32 %s143, 1
        %s293 = smul.addr %s292, 48
        %s294 = scalar_lea.vmem [#allocation12], %s293
        %v295 = vlaneseq
        %v296 = vand.u32 %v295, 127
        %vm297 = vcmp.lt.s32.totalorder %v296, 0
        %v298 = vsub.s32 0, %v296
        %v299 = vsel %vm297, %v298, %v296
        %v300 = vshrl.u32 %v299, 4
        %v301 = vand.u32 %v299, 15
        %v302 = vsub.s32 0, %v301
        %v303 = vsel %vm297, %v302, %v301
        %vm304 = vcmp.ne.s32.totalorder %v303, 0
        %vm305 = vcmp.lt.s32.totalorder %v303, 0
        %vm306 = vmand %vm305, %vm304
        %v307 = vadd.s32 %v303, 16
        %v308 = vsel %vm306, %v307, %v303
        %vm309 = vcmp.ne.s32.totalorder %v308, 0
        %vm310 = vcmp.ne.s32.totalorder %v308, 15
        %v311 = vlaneseq
        %v312 = vshrl.u32 %v311, 7
        %v313 = vadd.s32 %v312, 8
        %vm314 = vcmp.ne.s32.totalorder %v312, 0
        %vm315 = vcmp.ne.s32.totalorder %v313, 0
        %vm316 = vcmp.ne.s32.totalorder %v312, 15
        %vm317 = vcmp.ne.s32.totalorder %v313, 15
        %v318 = vld [vmem:[%s251] sm:$0xff]
        %v319 = vld [vmem:[%s251 + $0x8] sm:$0xff]
        %s320 = scalar_lea.vmem %s251, 16 [#allocation2]
        %v321 = vld [vmem:[%s320] sm:$0xff]
        %v322 = vld [vmem:[%s320 + $0x8] sm:$0xff]
        %s323 = scalar_lea.vmem %s251, 32 [#allocation2]
        %v324 = vld [vmem:[%s323] sm:$0xff]
        %v325 = vld [vmem:[%s323 + $0x8] sm:$0xff]
        %s326 = sld [smem:[#allocation7]]
        %v327 = vstv %s326
        %s328 = sld [smem:[#allocation7 + $0x1]]
        %v329 = vstv %s328
        %s330 = sld [smem:[#allocation7 + $0x2]]
        %v331 = vstv %s330
        %v332 = vrot.slane %v318, 7
        %v333 = vrot.slane %v319, 7
        %vm334 = vcmp.lt.s32.totalorder %v312, 1
        %v335 = vsel %vm334, %v332, %v333
        %v336 = vsel %vm334, %v333, %v332
        %v337 = vsel %vm314, %v336, 0.0
        %v338 = vsel %vm315, %v335, 0.0
        %v339 = vrot.slane %v318, 1
        %v340 = vrot.slane %v319, 1
        %vm341 = vcmp.lt.s32.totalorder %v312, 7
        %v342 = vsel %vm341, %v339, %v340
        %v343 = vsel %vm341, %v340, %v339
        %v344 = vsel %vm316, %v342, 0.0
        %v345 = vsel %vm317, %v343, 0.0
        %346 = vrot.lane.b32.xlu0 %v337, 1
        %v347 = vpop.permute.xlu0 %346
        %348 = vrot.lane.b32.xlu0 %v338, 1
        %v349 = vpop.permute.xlu0 %348
        %v350 = vsel %vm309, %v347, 0.0
        %v351 = vsel %vm309, %v349, 0.0
        %352 = vrot.lane.b32.xlu0 %v337, 127
        %v353 = vpop.permute.xlu0 %352
        %354 = vrot.lane.b32.xlu0 %v338, 127
        %v355 = vpop.permute.xlu0 %354
        %v356 = vsel %vm310, %v353, 0.0
        %v357 = vsel %vm310, %v355, 0.0
        %s358 = sld [smem:[#allocation6]]
        %v359 = vstv %s358
        %v360 = vmul.f32 %v359, %v350
        %v361 = vmul.f32 %v359, %v351
        %v362 = vadd.f32 %v327, %v360
        %v363 = vadd.f32 %v327, %v361
        %s364 = sld [smem:[#allocation6 + $0x1b]]
        %v365 = vstv %s364
        %v366 = vmul.f32 %v365, %v350
        %v367 = vmul.f32 %v365, %v351
        %v368 = vadd.f32 %v329, %v366
        %v369 = vadd.f32 %v329, %v367
        %s370 = sld [smem:[#allocation6 + $0x36]]
        %v371 = vstv %s370
        %v372 = vmul.f32 %v371, %v350
        %v373 = vmul.f32 %v371, %v351
        %v374 = vadd.f32 %v331, %v372
        %v375 = vadd.f32 %v331, %v373
        %s376 = sld [smem:[#allocation6 + $0x1]]
        %v377 = vstv %s376
        %v378 = vmul.f32 %v377, %v337
        %v379 = vmul.f32 %v377, %v338
        %v380 = vadd.f32 %v362, %v378
        %v381 = vadd.f32 %v363, %v379
        %s382 = sld [smem:[#allocation6 + $0x1c]]
        %v383 = vstv %s382
        %v384 = vmul.f32 %v383, %v337
        %v385 = vmul.f32 %v383, %v338
        %v386 = vadd.f32 %v368, %v384
        %v387 = vadd.f32 %v369, %v385
        %s388 = sld [smem:[#allocation6 + $0x37]]
        %v389 = vstv %s388
        %v390 = vmul.f32 %v389, %v337
        %v391 = vmul.f32 %v389, %v338
        %v392 = vadd.f32 %v374, %v390
        %v393 = vadd.f32 %v375, %v391
        %s394 = sld [smem:[#allocation6 + $0x2]]
        %v395 = vstv %s394
        %v396 = vmul.f32 %v395, %v356
        %v397 = vmul.f32 %v395, %v357
        %v398 = vadd.f32 %v380, %v396
        %v399 = vadd.f32 %v381, %v397
        %s400 = sld [smem:[#allocation6 + $0x1d]]
        %v401 = vstv %s400
        %v402 = vmul.f32 %v401, %v356
        %v403 = vmul.f32 %v401, %v357
        %v404 = vadd.f32 %v386, %v402
        %v405 = vadd.f32 %v387, %v403
        %s406 = sld [smem:[#allocation6 + $0x38]]
        %v407 = vstv %s406
        %v408 = vmul.f32 %v407, %v356
        %v409 = vmul.f32 %v407, %v357
        %v410 = vadd.f32 %v392, %v408
        %v411 = vadd.f32 %v393, %v409
        %412 = vrot.lane.b32.xlu0 %v318, 1
        %v413 = vpop.permute.xlu0 %412
        %414 = vrot.lane.b32.xlu0 %v319, 1
        %v415 = vpop.permute.xlu0 %414
        %v416 = vsel %vm309, %v413, 0.0
        %v417 = vsel %vm309, %v415, 0.0
        %418 = vrot.lane.b32.xlu0 %v318, 127
        %v419 = vpop.permute.xlu0 %418
        %420 = vrot.lane.b32.xlu0 %v319, 127
        %v421 = vpop.permute.xlu0 %420
        %v422 = vsel %vm310, %v419, 0.0
        %v423 = vsel %vm310, %v421, 0.0
        %s424 = sld [smem:[#allocation6 + $0x3]]
        %v425 = vstv %s424
        %v426 = vmul.f32 %v425, %v416
        %v427 = vmul.f32 %v425, %v417
        %v428 = vadd.f32 %v398, %v426
        %v429 = vadd.f32 %v399, %v427
        %s430 = sld [smem:[#allocation6 + $0x1e]]
        %v431 = vstv %s430
        %v432 = vmul.f32 %v431, %v416
        %v433 = vmul.f32 %v431, %v417
        %v434 = vadd.f32 %v404, %v432
        %v435 = vadd.f32 %v405, %v433
        %s436 = sld [smem:[#allocation6 + $0x39]]
        %v437 = vstv %s436
        %v438 = vmul.f32 %v437, %v416
        %v439 = vmul.f32 %v437, %v417
        %v440 = vadd.f32 %v410, %v438
        %v441 = vadd.f32 %v411, %v439
        %s442 = sld [smem:[#allocation6 + $0x4]]
        %v443 = vstv %s442
        %v444 = vmul.f32 %v443, %v318
        %v445 = vmul.f32 %v443, %v319
        %v446 = vadd.f32 %v428, %v444
        %v447 = vadd.f32 %v429, %v445
        %s448 = sld [smem:[#allocation6 + $0x1f]]
        %v449 = vstv %s448
        %v450 = vmul.f32 %v449, %v318
        %v451 = vmul.f32 %v449, %v319
        %v452 = vadd.f32 %v434, %v450
        %v453 = vadd.f32 %v435, %v451
        %s454 = sld [smem:[#allocation6 + $0x3a]]
        %v455 = vstv %s454
        %v456 = vmul.f32 %v455, %v318
        %v457 = vmul.f32 %v455, %v319
        %v458 = vadd.f32 %v440, %v456
        %v459 = vadd.f32 %v441, %v457
        %s460 = sld [smem:[#allocation6 + $0x5]]
        %v461 = vstv %s460
        %v462 = vmul.f32 %v461, %v422
        %v463 = vmul.f32 %v461, %v423
        %v464 = vadd.f32 %v446, %v462
        %v465 = vadd.f32 %v447, %v463
        %s466 = sld [smem:[#allocation6 + $0x20]]
        %v467 = vstv %s466
        %v468 = vmul.f32 %v467, %v422
        %v469 = vmul.f32 %v467, %v423
        %v470 = vadd.f32 %v452, %v468
        %v471 = vadd.f32 %v453, %v469
        %s472 = sld [smem:[#allocation6 + $0x3b]]
        %v473 = vstv %s472
        %v474 = vmul.f32 %v473, %v422
        %v475 = vmul.f32 %v473, %v423
        %v476 = vadd.f32 %v458, %v474
        %v477 = vadd.f32 %v459, %v475
        %478 = vrot.lane.b32.xlu0 %v344, 1
        %v479 = vpop.permute.xlu0 %478
        %480 = vrot.lane.b32.xlu0 %v345, 1
        %v481 = vpop.permute.xlu0 %480
        %v482 = vsel %vm309, %v479, 0.0
        %v483 = vsel %vm309, %v481, 0.0
        %484 = vrot.lane.b32.xlu0 %v344, 127
        %v485 = vpop.permute.xlu0 %484
        %486 = vrot.lane.b32.xlu0 %v345, 127
        %v487 = vpop.permute.xlu0 %486
        %v488 = vsel %vm310, %v485, 0.0
        %v489 = vsel %vm310, %v487, 0.0
        %s490 = sld [smem:[#allocation6 + $0x6]]
        %v491 = vstv %s490
        %v492 = vmul.f32 %v491, %v482
        %v493 = vmul.f32 %v491, %v483
        %v494 = vadd.f32 %v464, %v492
        %v495 = vadd.f32 %v465, %v493
        %s496 = sld [smem:[#allocation6 + $0x21]]
        %v497 = vstv %s496
        %v498 = vmul.f32 %v497, %v482
        %v499 = vmul.f32 %v497, %v483
        %v500 = vadd.f32 %v470, %v498
        %v501 = vadd.f32 %v471, %v499
        %s502 = sld [smem:[#allocation6 + $0x3c]]
        %v503 = vstv %s502
        %v504 = vmul.f32 %v503, %v482
        %v505 = vmul.f32 %v503, %v483
        %v506 = vadd.f32 %v476, %v504
        %v507 = vadd.f32 %v477, %v505
        %s508 = sld [smem:[#allocation6 + $0x7]]
        %v509 = vstv %s508
        %v510 = vmul.f32 %v509, %v344
        %v511 = vmul.f32 %v509, %v345
        %v512 = vadd.f32 %v494, %v510
        %v513 = vadd.f32 %v495, %v511
        %s514 = sld [smem:[#allocation6 + $0x22]]
        %v515 = vstv %s514
        %v516 = vmul.f32 %v515, %v344
        %v517 = vmul.f32 %v515, %v345
        %v518 = vadd.f32 %v500, %v516
        %v519 = vadd.f32 %v501, %v517
        %s520 = sld [smem:[#allocation6 + $0x3d]]
        %v521 = vstv %s520
        %v522 = vmul.f32 %v521, %v344
        %v523 = vmul.f32 %v521, %v345
        %v524 = vadd.f32 %v506, %v522
        %v525 = vadd.f32 %v507, %v523
        %s526 = sld [smem:[#allocation6 + $0x8]]
        %v527 = vstv %s526
        %v528 = vmul.f32 %v527, %v488
        %v529 = vmul.f32 %v527, %v489
        %v530 = vadd.f32 %v512, %v528
        %v531 = vadd.f32 %v513, %v529
        %s532 = sld [smem:[#allocation6 + $0x23]]
        %v533 = vstv %s532
        %v534 = vmul.f32 %v533, %v488
        %v535 = vmul.f32 %v533, %v489
        %v536 = vadd.f32 %v518, %v534
        %v537 = vadd.f32 %v519, %v535
        %s538 = sld [smem:[#allocation6 + $0x3e]]
        %v539 = vstv %s538
        %v540 = vmul.f32 %v539, %v488
        %v541 = vmul.f32 %v539, %v489
        %v542 = vadd.f32 %v524, %v540
        %v543 = vadd.f32 %v525, %v541
        %v544 = vrot.slane %v321, 7
        %v545 = vrot.slane %v322, 7
        %v546 = vsel %vm334, %v544, %v545
        %v547 = vsel %vm334, %v545, %v544
        %v548 = vsel %vm314, %v547, 0.0
        %v549 = vsel %vm315, %v546, 0.0
        %v550 = vrot.slane %v321, 1
        %v551 = vrot.slane %v322, 1
        %v552 = vsel %vm341, %v550, %v551
        %v553 = vsel %vm341, %v551, %v550
        %v554 = vsel %vm316, %v552, 0.0
        %v555 = vsel %vm317, %v553, 0.0
        %556 = vrot.lane.b32.xlu0 %v548, 1
        %v557 = vpop.permute.xlu0 %556
        %558 = vrot.lane.b32.xlu0 %v549, 1
        %v559 = vpop.permute.xlu0 %558
        %v560 = vsel %vm309, %v557, 0.0
        %v561 = vsel %vm309, %v559, 0.0
        %562 = vrot.lane.b32.xlu0 %v548, 127
        %v563 = vpop.permute.xlu0 %562
        %564 = vrot.lane.b32.xlu0 %v549, 127
        %v565 = vpop.permute.xlu0 %564
        %v566 = vsel %vm310, %v563, 0.0
        %v567 = vsel %vm310, %v565, 0.0
        %s568 = sld [smem:[#allocation6 + $0x9]]
        %v569 = vstv %s568
        %v570 = vmul.f32 %v569, %v560
        %v571 = vmul.f32 %v569, %v561
        %v572 = vadd.f32 %v530, %v570
        %v573 = vadd.f32 %v531, %v571
        %s574 = sld [smem:[#allocation6 + $0x24]]
        %v575 = vstv %s574
        %v576 = vmul.f32 %v575, %v560
        %v577 = vmul.f32 %v575, %v561
        %v578 = vadd.f32 %v536, %v576
        %v579 = vadd.f32 %v537, %v577
        %s580 = sld [smem:[#allocation6 + $0x3f]]
        %v581 = vstv %s580
        %v582 = vmul.f32 %v581, %v560
        %v583 = vmul.f32 %v581, %v561
        %v584 = vadd.f32 %v542, %v582
        %v585 = vadd.f32 %v543, %v583
        %s586 = sld [smem:[#allocation6 + $0xa]]
        %v587 = vstv %s586
        %v588 = vmul.f32 %v587, %v548
        %v589 = vmul.f32 %v587, %v549
        %v590 = vadd.f32 %v572, %v588
        %v591 = vadd.f32 %v573, %v589
        %s592 = sld [smem:[#allocation6 + $0x25]]
        %v593 = vstv %s592
        %v594 = vmul.f32 %v593, %v548
        %v595 = vmul.f32 %v593, %v549
        %v596 = vadd.f32 %v578, %v594
        %v597 = vadd.f32 %v579, %v595
        %s598 = sld [smem:[#allocation6 + $0x40]]
        %v599 = vstv %s598
        %v600 = vmul.f32 %v599, %v548
        %v601 = vmul.f32 %v599, %v549
        %v602 = vadd.f32 %v584, %v600
        %v603 = vadd.f32 %v585, %v601
        %s604 = sld [smem:[#allocation6 + $0xb]]
        %v605 = vstv %s604
        %v606 = vmul.f32 %v605, %v566
        %v607 = vmul.f32 %v605, %v567
        %v608 = vadd.f32 %v590, %v606
        %v609 = vadd.f32 %v591, %v607
        %s610 = sld [smem:[#allocation6 + $0x26]]
        %v611 = vstv %s610
        %v612 = vmul.f32 %v611, %v566
        %v613 = vmul.f32 %v611, %v567
        %v614 = vadd.f32 %v596, %v612
        %v615 = vadd.f32 %v597, %v613
        %s616 = sld [smem:[#allocation6 + $0x41]]
        %v617 = vstv %s616
        %v618 = vmul.f32 %v617, %v566
        %v619 = vmul.f32 %v617, %v567
        %v620 = vadd.f32 %v602, %v618
        %v621 = vadd.f32 %v603, %v619
        %622 = vrot.lane.b32.xlu0 %v321, 1
        %v623 = vpop.permute.xlu0 %622
        %624 = vrot.lane.b32.xlu0 %v322, 1
        %v625 = vpop.permute.xlu0 %624
        %v626 = vsel %vm309, %v623, 0.0
        %v627 = vsel %vm309, %v625, 0.0
        %628 = vrot.lane.b32.xlu0 %v321, 127
        %v629 = vpop.permute.xlu0 %628
        %630 = vrot.lane.b32.xlu0 %v322, 127
        %v631 = vpop.permute.xlu0 %630
        %v632 = vsel %vm310, %v629, 0.0
        %v633 = vsel %vm310, %v631, 0.0
        %s634 = sld [smem:[#allocation6 + $0xc]]
        %v635 = vstv %s634
        %v636 = vmul.f32 %v635, %v626
        %v637 = vmul.f32 %v635, %v627
        %v638 = vadd.f32 %v608, %v636
        %v639 = vadd.f32 %v609, %v637
        %s640 = sld [smem:[#allocation6 + $0x27]]
        %v641 = vstv %s640
        %v642 = vmul.f32 %v641, %v626
        %v643 = vmul.f32 %v641, %v627
        %v644 = vadd.f32 %v614, %v642
        %v645 = vadd.f32 %v615, %v643
        %s646 = sld [smem:[#allocation6 + $0x42]]
        %v647 = vstv %s646
        %v648 = vmul.f32 %v647, %v626
        %v649 = vmul.f32 %v647, %v627
        %v650 = vadd.f32 %v620, %v648
        %v651 = vadd.f32 %v621, %v649
        %s652 = sld [smem:[#allocation6 + $0xd]]
        %v653 = vstv %s652
        %v654 = vmul.f32 %v653, %v321
        %v655 = vmul.f32 %v653, %v322
        %v656 = vadd.f32 %v638, %v654
        %v657 = vadd.f32 %v639, %v655
        %s658 = sld [smem:[#allocation6 + $0x28]]
        %v659 = vstv %s658
        %v660 = vmul.f32 %v659, %v321
        %v661 = vmul.f32 %v659, %v322
        %v662 = vadd.f32 %v644, %v660
        %v663 = vadd.f32 %v645, %v661
        %s664 = sld [smem:[#allocation6 + $0x43]]
        %v665 = vstv %s664
        %v666 = vmul.f32 %v665, %v321
        %v667 = vmul.f32 %v665, %v322
        %v668 = vadd.f32 %v650, %v666
        %v669 = vadd.f32 %v651, %v667
        %s670 = sld [smem:[#allocation6 + $0xe]]
        %v671 = vstv %s670
        %v672 = vmul.f32 %v671, %v632
        %v673 = vmul.f32 %v671, %v633
        %v674 = vadd.f32 %v656, %v672
        %v675 = vadd.f32 %v657, %v673
        %s676 = sld [smem:[#allocation6 + $0x29]]
        %v677 = vstv %s676
        %v678 = vmul.f32 %v677, %v632
        %v679 = vmul.f32 %v677, %v633
        %v680 = vadd.f32 %v662, %v678
        %v681 = vadd.f32 %v663, %v679
        %s682 = sld [smem:[#allocation6 + $0x44]]
        %v683 = vstv %s682
        %v684 = vmul.f32 %v683, %v632
        %v685 = vmul.f32 %v683, %v633
        %v686 = vadd.f32 %v668, %v684
        %v687 = vadd.f32 %v669, %v685
        %688 = vrot.lane.b32.xlu0 %v554, 1
        %v689 = vpop.permute.xlu0 %688
        %690 = vrot.lane.b32.xlu0 %v555, 1
        %v691 = vpop.permute.xlu0 %690
        %v692 = vsel %vm309, %v689, 0.0
        %v693 = vsel %vm309, %v691, 0.0
        %694 = vrot.lane.b32.xlu0 %v554, 127
        %v695 = vpop.permute.xlu0 %694
        %696 = vrot.lane.b32.xlu0 %v555, 127
        %v697 = vpop.permute.xlu0 %696
        %v698 = vsel %vm310, %v695, 0.0
        %v699 = vsel %vm310, %v697, 0.0
        %s700 = sld [smem:[#allocation6 + $0xf]]
        %v701 = vstv %s700
        %v702 = vmul.f32 %v701, %v692
        %v703 = vmul.f32 %v701, %v693
        %v704 = vadd.f32 %v674, %v702
        %v705 = vadd.f32 %v675, %v703
        %s706 = sld [smem:[#allocation6 + $0x2a]]
        %v707 = vstv %s706
        %v708 = vmul.f32 %v707, %v692
        %v709 = vmul.f32 %v707, %v693
        %v710 = vadd.f32 %v680, %v708
        %v711 = vadd.f32 %v681, %v709
        %s712 = sld [smem:[#allocation6 + $0x45]]
        %v713 = vstv %s712
        %v714 = vmul.f32 %v713, %v692
        %v715 = vmul.f32 %v713, %v693
        %v716 = vadd.f32 %v686, %v714
        %v717 = vadd.f32 %v687, %v715
        %s718 = sld [smem:[#allocation6 + $0x10]]
        %v719 = vstv %s718
        %v720 = vmul.f32 %v719, %v554
        %v721 = vmul.f32 %v719, %v555
        %v722 = vadd.f32 %v704, %v720
        %v723 = vadd.f32 %v705, %v721
        %s724 = sld [smem:[#allocation6 + $0x2b]]
        %v725 = vstv %s724
        %v726 = vmul.f32 %v725, %v554
        %v727 = vmul.f32 %v725, %v555
        %v728 = vadd.f32 %v710, %v726
        %v729 = vadd.f32 %v711, %v727
        %s730 = sld [smem:[#allocation6 + $0x46]]
        %v731 = vstv %s730
        %v732 = vmul.f32 %v731, %v554
        %v733 = vmul.f32 %v731, %v555
        %v734 = vadd.f32 %v716, %v732
        %v735 = vadd.f32 %v717, %v733
        %s736 = sld [smem:[#allocation6 + $0x11]]
        %v737 = vstv %s736
        %v738 = vmul.f32 %v737, %v698
        %v739 = vmul.f32 %v737, %v699
        %v740 = vadd.f32 %v722, %v738
        %v741 = vadd.f32 %v723, %v739
        %s742 = sld [smem:[#allocation6 + $0x2c]]
        %v743 = vstv %s742
        %v744 = vmul.f32 %v743, %v698
        %v745 = vmul.f32 %v743, %v699
        %v746 = vadd.f32 %v728, %v744
        %v747 = vadd.f32 %v729, %v745
        %s748 = sld [smem:[#allocation6 + $0x47]]
        %v749 = vstv %s748
        %v750 = vmul.f32 %v749, %v698
        %v751 = vmul.f32 %v749, %v699
        %v752 = vadd.f32 %v734, %v750
        %v753 = vadd.f32 %v735, %v751
        %v754 = vrot.slane %v324, 7
        %v755 = vrot.slane %v325, 7
        %v756 = vsel %vm334, %v754, %v755
        %v757 = vsel %vm334, %v755, %v754
        %v758 = vsel %vm314, %v757, 0.0
        %v759 = vsel %vm315, %v756, 0.0
        %v760 = vrot.slane %v324, 1
        %v761 = vrot.slane %v325, 1
        %v762 = vsel %vm341, %v760, %v761
        %v763 = vsel %vm341, %v761, %v760
        %v764 = vsel %vm316, %v762, 0.0
        %v765 = vsel %vm317, %v763, 0.0
        %766 = vrot.lane.b32.xlu0 %v758, 1
        %v767 = vpop.permute.xlu0 %766
        %768 = vrot.lane.b32.xlu0 %v759, 1
        %v769 = vpop.permute.xlu0 %768
        %v770 = vsel %vm309, %v767, 0.0
        %v771 = vsel %vm309, %v769, 0.0
        %772 = vrot.lane.b32.xlu0 %v758, 127
        %v773 = vpop.permute.xlu0 %772
        %774 = vrot.lane.b32.xlu0 %v759, 127
        %v775 = vpop.permute.xlu0 %774
        %v776 = vsel %vm310, %v773, 0.0
        %v777 = vsel %vm310, %v775, 0.0
        %s778 = sld [smem:[#allocation6 + $0x12]]
        %v779 = vstv %s778
        %v780 = vmul.f32 %v779, %v770
        %v781 = vmul.f32 %v779, %v771
        %v782 = vadd.f32 %v740, %v780
        %v783 = vadd.f32 %v741, %v781
        %s784 = sld [smem:[#allocation6 + $0x2d]]
        %v785 = vstv %s784
        %v786 = vmul.f32 %v785, %v770
        %v787 = vmul.f32 %v785, %v771
        %v788 = vadd.f32 %v746, %v786
        %v789 = vadd.f32 %v747, %v787
        %s790 = sld [smem:[#allocation6 + $0x48]]
        %v791 = vstv %s790
        %v792 = vmul.f32 %v791, %v770
        %v793 = vmul.f32 %v791, %v771
        %v794 = vadd.f32 %v752, %v792
        %v795 = vadd.f32 %v753, %v793
        %s796 = sld [smem:[#allocation6 + $0x13]]
        %v797 = vstv %s796
        %v798 = vmul.f32 %v797, %v758
        %v799 = vmul.f32 %v797, %v759
        %v800 = vadd.f32 %v782, %v798
        %v801 = vadd.f32 %v783, %v799
        %s802 = sld [smem:[#allocation6 + $0x2e]]
        %v803 = vstv %s802
        %v804 = vmul.f32 %v803, %v758
        %v805 = vmul.f32 %v803, %v759
        %v806 = vadd.f32 %v788, %v804
        %v807 = vadd.f32 %v789, %v805
        %s808 = sld [smem:[#allocation6 + $0x49]]
        %v809 = vstv %s808
        %v810 = vmul.f32 %v809, %v758
        %v811 = vmul.f32 %v809, %v759
        %v812 = vadd.f32 %v794, %v810
        %v813 = vadd.f32 %v795, %v811
        %s814 = sld [smem:[#allocation6 + $0x14]]
        %v815 = vstv %s814
        %v816 = vmul.f32 %v815, %v776
        %v817 = vmul.f32 %v815, %v777
        %v818 = vadd.f32 %v800, %v816
        %v819 = vadd.f32 %v801, %v817
        %s820 = sld [smem:[#allocation6 + $0x2f]]
        %v821 = vstv %s820
        %v822 = vmul.f32 %v821, %v776
        %v823 = vmul.f32 %v821, %v777
        %v824 = vadd.f32 %v806, %v822
        %v825 = vadd.f32 %v807, %v823
        %s826 = sld [smem:[#allocation6 + $0x4a]]
        %v827 = vstv %s826
        %v828 = vmul.f32 %v827, %v776
        %v829 = vmul.f32 %v827, %v777
        %v830 = vadd.f32 %v812, %v828
        %v831 = vadd.f32 %v813, %v829
        %832 = vrot.lane.b32.xlu0 %v324, 1
        %v833 = vpop.permute.xlu0 %832
        %834 = vrot.lane.b32.xlu0 %v325, 1
        %v835 = vpop.permute.xlu0 %834
        %v836 = vsel %vm309, %v833, 0.0
        %v837 = vsel %vm309, %v835, 0.0
        %838 = vrot.lane.b32.xlu0 %v324, 127
        %v839 = vpop.permute.xlu0 %838
        %840 = vrot.lane.b32.xlu0 %v325, 127
        %v841 = vpop.permute.xlu0 %840
        %v842 = vsel %vm310, %v839, 0.0
        %v843 = vsel %vm310, %v841, 0.0
        %s844 = sld [smem:[#allocation6 + $0x15]]
        %v845 = vstv %s844
        %v846 = vmul.f32 %v845, %v836
        %v847 = vmul.f32 %v845, %v837
        %v848 = vadd.f32 %v818, %v846
        %v849 = vadd.f32 %v819, %v847
        %s850 = sld [smem:[#allocation6 + $0x30]]
        %v851 = vstv %s850
        %v852 = vmul.f32 %v851, %v836
        %v853 = vmul.f32 %v851, %v837
        %v854 = vadd.f32 %v824, %v852
        %v855 = vadd.f32 %v825, %v853
        %s856 = sld [smem:[#allocation6 + $0x4b]]
        %v857 = vstv %s856
        %v858 = vmul.f32 %v857, %v836
        %v859 = vmul.f32 %v857, %v837
        %v860 = vadd.f32 %v830, %v858
        %v861 = vadd.f32 %v831, %v859
        %s862 = sld [smem:[#allocation6 + $0x16]]
        %v863 = vstv %s862
        %v864 = vmul.f32 %v863, %v324
        %v865 = vmul.f32 %v863, %v325
        %v866 = vadd.f32 %v848, %v864
        %v867 = vadd.f32 %v849, %v865
        %s868 = sld [smem:[#allocation6 + $0x31]]
        %v869 = vstv %s868
        %v870 = vmul.f32 %v869, %v324
        %v871 = vmul.f32 %v869, %v325
        %v872 = vadd.f32 %v854, %v870
        %v873 = vadd.f32 %v855, %v871
        %s874 = sld [smem:[#allocation6 + $0x4c]]
        %v875 = vstv %s874
        %v876 = vmul.f32 %v875, %v324
        %v877 = vmul.f32 %v875, %v325
        %v878 = vadd.f32 %v860, %v876
        %v879 = vadd.f32 %v861, %v877
        %s880 = sld [smem:[#allocation6 + $0x17]]
        %v881 = vstv %s880
        %v882 = vmul.f32 %v881, %v842
        %v883 = vmul.f32 %v881, %v843
        %v884 = vadd.f32 %v866, %v882
        %v885 = vadd.f32 %v867, %v883
        %s886 = sld [smem:[#allocation6 + $0x32]]
        %v887 = vstv %s886
        %v888 = vmul.f32 %v887, %v842
        %v889 = vmul.f32 %v887, %v843
        %v890 = vadd.f32 %v872, %v888
        %v891 = vadd.f32 %v873, %v889
        %s892 = sld [smem:[#allocation6 + $0x4d]]
        %v893 = vstv %s892
        %v894 = vmul.f32 %v893, %v842
        %v895 = vmul.f32 %v893, %v843
        %v896 = vadd.f32 %v878, %v894
        %v897 = vadd.f32 %v879, %v895
        %898 = vrot.lane.b32.xlu0 %v764, 1
        %v899 = vpop.permute.xlu0 %898
        %900 = vrot.lane.b32.xlu0 %v765, 1
        %v901 = vpop.permute.xlu0 %900
        %v902 = vsel %vm309, %v899, 0.0
        %v903 = vsel %vm309, %v901, 0.0
        %904 = vrot.lane.b32.xlu0 %v764, 127
        %v905 = vpop.permute.xlu0 %904
        %906 = vrot.lane.b32.xlu0 %v765, 127
        %v907 = vpop.permute.xlu0 %906
        %v908 = vsel %vm310, %v905, 0.0
        %v909 = vsel %vm310, %v907, 0.0
        %s910 = sld [smem:[#allocation6 + $0x18]]
        %v911 = vstv %s910
        %v912 = vmul.f32 %v911, %v902
        %v913 = vmul.f32 %v911, %v903
        %v914 = vadd.f32 %v884, %v912
        %v915 = vadd.f32 %v885, %v913
        %s916 = sld [smem:[#allocation6 + $0x33]]
        %v917 = vstv %s916
        %v918 = vmul.f32 %v917, %v902
        %v919 = vmul.f32 %v917, %v903
        %v920 = vadd.f32 %v890, %v918
        %v921 = vadd.f32 %v891, %v919
        %s922 = sld [smem:[#allocation6 + $0x4e]]
        %v923 = vstv %s922
        %v924 = vmul.f32 %v923, %v902
        %v925 = vmul.f32 %v923, %v903
        %v926 = vadd.f32 %v896, %v924
        %v927 = vadd.f32 %v897, %v925
        %s928 = sld [smem:[#allocation6 + $0x19]]
        %v929 = vstv %s928
        %v930 = vmul.f32 %v929, %v764
        %v931 = vmul.f32 %v929, %v765
        %v932 = vadd.f32 %v914, %v930
        %v933 = vadd.f32 %v915, %v931
        %s934 = sld [smem:[#allocation6 + $0x34]]
        %v935 = vstv %s934
        %v936 = vmul.f32 %v935, %v764
        %v937 = vmul.f32 %v935, %v765
        %v938 = vadd.f32 %v920, %v936
        %v939 = vadd.f32 %v921, %v937
        %s940 = sld [smem:[#allocation6 + $0x4f]]
        %v941 = vstv %s940
        %v942 = vmul.f32 %v941, %v764
        %v943 = vmul.f32 %v941, %v765
        %v944 = vadd.f32 %v926, %v942
        %v945 = vadd.f32 %v927, %v943
        %s946 = sld [smem:[#allocation6 + $0x1a]]
        %v947 = vstv %s946
        %v948 = vmul.f32 %v947, %v908
        %v949 = vmul.f32 %v947, %v909
        %v950 = vadd.f32 %v932, %v948
        %v951 = vadd.f32 %v933, %v949
        %s952 = sld [smem:[#allocation6 + $0x35]]
        %v953 = vstv %s952
        %v954 = vmul.f32 %v953, %v908
        %v955 = vmul.f32 %v953, %v909
        %v956 = vadd.f32 %v938, %v954
        %v957 = vadd.f32 %v939, %v955
        %s958 = sld [smem:[#allocation6 + $0x50]]
        %v959 = vstv %s958
        %v960 = vmul.f32 %v959, %v908
        %v961 = vmul.f32 %v959, %v909
        %v962 = vadd.f32 %v944, %v960
        %v963 = vadd.f32 %v945, %v961
        %v964 = vmax.f32 %v950, 0.0
        %v965 = vmax.f32 %v951, 0.0
        %v966 = vmax.f32 %v956, 0.0
        %v967 = vmax.f32 %v957, 0.0
        %v968 = vmax.f32 %v962, 0.0
        %v969 = vmax.f32 %v963, 0.0
        %s970 = sld [smem:[#allocation10]]
        %v971 = vstv %s970
        %s972 = sld [smem:[#allocation10 + $0x1]]
        %v973 = vstv %s972
        %s974 = sld [smem:[#allocation10 + $0x2]]
        %v975 = vstv %s974
        %v976 = vrot.slane %v964, 7
        %v977 = vrot.slane %v965, 7
        %v978 = vsel %vm334, %v976, %v977
        %v979 = vsel %vm334, %v977, %v976
        %v980 = vsel %vm314, %v979, 0.0
        %v981 = vsel %vm315, %v978, 0.0
        %v982 = vrot.slane %v964, 1
        %v983 = vrot.slane %v965, 1
        %v984 = vsel %vm341, %v982, %v983
        %v985 = vsel %vm341, %v983, %v982
        %v986 = vsel %vm316, %v984, 0.0
        %v987 = vsel %vm317, %v985, 0.0
        %988 = vrot.lane.b32.xlu0 %v980, 1
        %v989 = vpop.permute.xlu0 %988
        %990 = vrot.lane.b32.xlu0 %v981, 1
        %v991 = vpop.permute.xlu0 %990
        %v992 = vsel %vm309, %v989, 0.0
        %v993 = vsel %vm309, %v991, 0.0
        %994 = vrot.lane.b32.xlu0 %v980, 127
        %v995 = vpop.permute.xlu0 %994
        %996 = vrot.lane.b32.xlu0 %v981, 127
        %v997 = vpop.permute.xlu0 %996
        %v998 = vsel %vm310, %v995, 0.0
        %v999 = vsel %vm310, %v997, 0.0
        %s1000 = sld [smem:[#allocation9]]
        %v1001 = vstv %s1000
        %v1002 = vmul.f32 %v1001, %v992
        %v1003 = vmul.f32 %v1001, %v993
        %v1004 = vadd.f32 %v971, %v1002
        %v1005 = vadd.f32 %v971, %v1003
        %s1006 = sld [smem:[#allocation9 + $0x1b]]
        %v1007 = vstv %s1006
        %v1008 = vmul.f32 %v1007, %v992
        %v1009 = vmul.f32 %v1007, %v993
        %v1010 = vadd.f32 %v973, %v1008
        %v1011 = vadd.f32 %v973, %v1009
        %s1012 = sld [smem:[#allocation9 + $0x36]]
        %v1013 = vstv %s1012
        %v1014 = vmul.f32 %v1013, %v992
        %v1015 = vmul.f32 %v1013, %v993
        %v1016 = vadd.f32 %v975, %v1014
        %v1017 = vadd.f32 %v975, %v1015
        %s1018 = sld [smem:[#allocation9 + $0x1]]
        %v1019 = vstv %s1018
        %v1020 = vmul.f32 %v1019, %v980
        %v1021 = vmul.f32 %v1019, %v981
        %v1022 = vadd.f32 %v1004, %v1020
        %v1023 = vadd.f32 %v1005, %v1021
        %s1024 = sld [smem:[#allocation9 + $0x1c]]
        %v1025 = vstv %s1024
        %v1026 = vmul.f32 %v1025, %v980
        %v1027 = vmul.f32 %v1025, %v981
        %v1028 = vadd.f32 %v1010, %v1026
        %v1029 = vadd.f32 %v1011, %v1027
        %s1030 = sld [smem:[#allocation9 + $0x37]]
        %v1031 = vstv %s1030
        %v1032 = vmul.f32 %v1031, %v980
        %v1033 = vmul.f32 %v1031, %v981
        %v1034 = vadd.f32 %v1016, %v1032
        %v1035 = vadd.f32 %v1017, %v1033
        %s1036 = sld [smem:[#allocation9 + $0x2]]
        %v1037 = vstv %s1036
        %v1038 = vmul.f32 %v1037, %v998
        %v1039 = vmul.f32 %v1037, %v999
        %v1040 = vadd.f32 %v1022, %v1038
        %v1041 = vadd.f32 %v1023, %v1039
        %s1042 = sld [smem:[#allocation9 + $0x1d]]
        %v1043 = vstv %s1042
        %v1044 = vmul.f32 %v1043, %v998
        %v1045 = vmul.f32 %v1043, %v999
        %v1046 = vadd.f32 %v1028, %v1044
        %v1047 = vadd.f32 %v1029, %v1045
        %s1048 = sld [smem:[#allocation9 + $0x38]]
        %v1049 = vstv %s1048
        %v1050 = vmul.f32 %v1049, %v998
        %v1051 = vmul.f32 %v1049, %v999
        %v1052 = vadd.f32 %v1034, %v1050
        %v1053 = vadd.f32 %v1035, %v1051
        %1054 = vrot.lane.b32.xlu0 %v964, 1
        %v1055 = vpop.permute.xlu0 %1054
        %1056 = vrot.lane.b32.xlu0 %v965, 1
        %v1057 = vpop.permute.xlu0 %1056
        %v1058 = vsel %vm309, %v1055, 0.0
        %v1059 = vsel %vm309, %v1057, 0.0
        %1060 = vrot.lane.b32.xlu0 %v964, 127
        %v1061 = vpop.permute.xlu0 %1060
        %1062 = vrot.lane.b32.xlu0 %v965, 127
        %v1063 = vpop.permute.xlu0 %1062
        %v1064 = vsel %vm310, %v1061, 0.0
        %v1065 = vsel %vm310, %v1063, 0.0
        %s1066 = sld [smem:[#allocation9 + $0x3]]
        %v1067 = vstv %s1066
        %v1068 = vmul.f32 %v1067, %v1058
        %v1069 = vmul.f32 %v1067, %v1059
        %v1070 = vadd.f32 %v1040, %v1068
        %v1071 = vadd.f32 %v1041, %v1069
        %s1072 = sld [smem:[#allocation9 + $0x1e]]
        %v1073 = vstv %s1072
        %v1074 = vmul.f32 %v1073, %v1058
        %v1075 = vmul.f32 %v1073, %v1059
        %v1076 = vadd.f32 %v1046, %v1074
        %v1077 = vadd.f32 %v1047, %v1075
        %s1078 = sld [smem:[#allocation9 + $0x39]]
        %v1079 = vstv %s1078
        %v1080 = vmul.f32 %v1079, %v1058
        %v1081 = vmul.f32 %v1079, %v1059
        %v1082 = vadd.f32 %v1052, %v1080
        %v1083 = vadd.f32 %v1053, %v1081
        %s1084 = sld [smem:[#allocation9 + $0x4]]
        %v1085 = vstv %s1084
        %v1086 = vmul.f32 %v1085, %v964
        %v1087 = vmul.f32 %v1085, %v965
        %v1088 = vadd.f32 %v1070, %v1086
        %v1089 = vadd.f32 %v1071, %v1087
        %s1090 = sld [smem:[#allocation9 + $0x1f]]
        %v1091 = vstv %s1090
        %v1092 = vmul.f32 %v1091, %v964
        %v1093 = vmul.f32 %v1091, %v965
        %v1094 = vadd.f32 %v1076, %v1092
        %v1095 = vadd.f32 %v1077, %v1093
        %s1096 = sld [smem:[#allocation9 + $0x3a]]
        %v1097 = vstv %s1096
        %v1098 = vmul.f32 %v1097, %v964
        %v1099 = vmul.f32 %v1097, %v965
        %v1100 = vadd.f32 %v1082, %v1098
        %v1101 = vadd.f32 %v1083, %v1099
        %s1102 = sld [smem:[#allocation9 + $0x5]]
        %v1103 = vstv %s1102
        %v1104 = vmul.f32 %v1103, %v1064
        %v1105 = vmul.f32 %v1103, %v1065
        %v1106 = vadd.f32 %v1088, %v1104
        %v1107 = vadd.f32 %v1089, %v1105
        %s1108 = sld [smem:[#allocation9 + $0x20]]
        %v1109 = vstv %s1108
        %v1110 = vmul.f32 %v1109, %v1064
        %v1111 = vmul.f32 %v1109, %v1065
        %v1112 = vadd.f32 %v1094, %v1110
        %v1113 = vadd.f32 %v1095, %v1111
        %s1114 = sld [smem:[#allocation9 + $0x3b]]
        %v1115 = vstv %s1114
        %v1116 = vmul.f32 %v1115, %v1064
        %v1117 = vmul.f32 %v1115, %v1065
        %v1118 = vadd.f32 %v1100, %v1116
        %v1119 = vadd.f32 %v1101, %v1117
        %1120 = vrot.lane.b32.xlu0 %v986, 1
        %v1121 = vpop.permute.xlu0 %1120
        %1122 = vrot.lane.b32.xlu0 %v987, 1
        %v1123 = vpop.permute.xlu0 %1122
        %v1124 = vsel %vm309, %v1121, 0.0
        %v1125 = vsel %vm309, %v1123, 0.0
        %1126 = vrot.lane.b32.xlu0 %v986, 127
        %v1127 = vpop.permute.xlu0 %1126
        %1128 = vrot.lane.b32.xlu0 %v987, 127
        %v1129 = vpop.permute.xlu0 %1128
        %v1130 = vsel %vm310, %v1127, 0.0
        %v1131 = vsel %vm310, %v1129, 0.0
        %s1132 = sld [smem:[#allocation9 + $0x6]]
        %v1133 = vstv %s1132
        %v1134 = vmul.f32 %v1133, %v1124
        %v1135 = vmul.f32 %v1133, %v1125
        %v1136 = vadd.f32 %v1106, %v1134
        %v1137 = vadd.f32 %v1107, %v1135
        %s1138 = sld [smem:[#allocation9 + $0x21]]
        %v1139 = vstv %s1138
        %v1140 = vmul.f32 %v1139, %v1124
        %v1141 = vmul.f32 %v1139, %v1125
        %v1142 = vadd.f32 %v1112, %v1140
        %v1143 = vadd.f32 %v1113, %v1141
        %s1144 = sld [smem:[#allocation9 + $0x3c]]
        %v1145 = vstv %s1144
        %v1146 = vmul.f32 %v1145, %v1124
        %v1147 = vmul.f32 %v1145, %v1125
        %v1148 = vadd.f32 %v1118, %v1146
        %v1149 = vadd.f32 %v1119, %v1147
        %s1150 = sld [smem:[#allocation9 + $0x7]]
        %v1151 = vstv %s1150
        %v1152 = vmul.f32 %v1151, %v986
        %v1153 = vmul.f32 %v1151, %v987
        %v1154 = vadd.f32 %v1136, %v1152
        %v1155 = vadd.f32 %v1137, %v1153
        %s1156 = sld [smem:[#allocation9 + $0x22]]
        %v1157 = vstv %s1156
        %v1158 = vmul.f32 %v1157, %v986
        %v1159 = vmul.f32 %v1157, %v987
        %v1160 = vadd.f32 %v1142, %v1158
        %v1161 = vadd.f32 %v1143, %v1159
        %s1162 = sld [smem:[#allocation9 + $0x3d]]
        %v1163 = vstv %s1162
        %v1164 = vmul.f32 %v1163, %v986
        %v1165 = vmul.f32 %v1163, %v987
        %v1166 = vadd.f32 %v1148, %v1164
        %v1167 = vadd.f32 %v1149, %v1165
        %s1168 = sld [smem:[#allocation9 + $0x8]]
        %v1169 = vstv %s1168
        %v1170 = vmul.f32 %v1169, %v1130
        %v1171 = vmul.f32 %v1169, %v1131
        %v1172 = vadd.f32 %v1154, %v1170
        %v1173 = vadd.f32 %v1155, %v1171
        %s1174 = sld [smem:[#allocation9 + $0x23]]
        %v1175 = vstv %s1174
        %v1176 = vmul.f32 %v1175, %v1130
        %v1177 = vmul.f32 %v1175, %v1131
        %v1178 = vadd.f32 %v1160, %v1176
        %v1179 = vadd.f32 %v1161, %v1177
        %s1180 = sld [smem:[#allocation9 + $0x3e]]
        %v1181 = vstv %s1180
        %v1182 = vmul.f32 %v1181, %v1130
        %v1183 = vmul.f32 %v1181, %v1131
        %v1184 = vadd.f32 %v1166, %v1182
        %v1185 = vadd.f32 %v1167, %v1183
        %v1186 = vrot.slane %v966, 7
        %v1187 = vrot.slane %v967, 7
        %v1188 = vsel %vm334, %v1186, %v1187
        %v1189 = vsel %vm334, %v1187, %v1186
        %v1190 = vsel %vm314, %v1189, 0.0
        %v1191 = vsel %vm315, %v1188, 0.0
        %v1192 = vrot.slane %v966, 1
        %v1193 = vrot.slane %v967, 1
        %v1194 = vsel %vm341, %v1192, %v1193
        %v1195 = vsel %vm341, %v1193, %v1192
        %v1196 = vsel %vm316, %v1194, 0.0
        %v1197 = vsel %vm317, %v1195, 0.0
        %1198 = vrot.lane.b32.xlu0 %v1190, 1
        %v1199 = vpop.permute.xlu0 %1198
        %1200 = vrot.lane.b32.xlu0 %v1191, 1
        %v1201 = vpop.permute.xlu0 %1200
        %v1202 = vsel %vm309, %v1199, 0.0
        %v1203 = vsel %vm309, %v1201, 0.0
        %1204 = vrot.lane.b32.xlu0 %v1190, 127
        %v1205 = vpop.permute.xlu0 %1204
        %1206 = vrot.lane.b32.xlu0 %v1191, 127
        %v1207 = vpop.permute.xlu0 %1206
        %v1208 = vsel %vm310, %v1205, 0.0
        %v1209 = vsel %vm310, %v1207, 0.0
        %s1210 = sld [smem:[#allocation9 + $0x9]]
        %v1211 = vstv %s1210
        %v1212 = vmul.f32 %v1211, %v1202
        %v1213 = vmul.f32 %v1211, %v1203
        %v1214 = vadd.f32 %v1172, %v1212
        %v1215 = vadd.f32 %v1173, %v1213
        %s1216 = sld [smem:[#allocation9 + $0x24]]
        %v1217 = vstv %s1216
        %v1218 = vmul.f32 %v1217, %v1202
        %v1219 = vmul.f32 %v1217, %v1203
        %v1220 = vadd.f32 %v1178, %v1218
        %v1221 = vadd.f32 %v1179, %v1219
        %s1222 = sld [smem:[#allocation9 + $0x3f]]
        %v1223 = vstv %s1222
        %v1224 = vmul.f32 %v1223, %v1202
        %v1225 = vmul.f32 %v1223, %v1203
        %v1226 = vadd.f32 %v1184, %v1224
        %v1227 = vadd.f32 %v1185, %v1225
        %s1228 = sld [smem:[#allocation9 + $0xa]]
        %v1229 = vstv %s1228
        %v1230 = vmul.f32 %v1229, %v1190
        %v1231 = vmul.f32 %v1229, %v1191
        %v1232 = vadd.f32 %v1214, %v1230
        %v1233 = vadd.f32 %v1215, %v1231
        %s1234 = sld [smem:[#allocation9 + $0x25]]
        %v1235 = vstv %s1234
        %v1236 = vmul.f32 %v1235, %v1190
        %v1237 = vmul.f32 %v1235, %v1191
        %v1238 = vadd.f32 %v1220, %v1236
        %v1239 = vadd.f32 %v1221, %v1237
        %s1240 = sld [smem:[#allocation9 + $0x40]]
        %v1241 = vstv %s1240
        %v1242 = vmul.f32 %v1241, %v1190
        %v1243 = vmul.f32 %v1241, %v1191
        %v1244 = vadd.f32 %v1226, %v1242
        %v1245 = vadd.f32 %v1227, %v1243
        %s1246 = sld [smem:[#allocation9 + $0xb]]
        %v1247 = vstv %s1246
        %v1248 = vmul.f32 %v1247, %v1208
        %v1249 = vmul.f32 %v1247, %v1209
        %v1250 = vadd.f32 %v1232, %v1248
        %v1251 = vadd.f32 %v1233, %v1249
        %s1252 = sld [smem:[#allocation9 + $0x26]]
        %v1253 = vstv %s1252
        %v1254 = vmul.f32 %v1253, %v1208
        %v1255 = vmul.f32 %v1253, %v1209
        %v1256 = vadd.f32 %v1238, %v1254
        %v1257 = vadd.f32 %v1239, %v1255
        %s1258 = sld [smem:[#allocation9 + $0x41]]
        %v1259 = vstv %s1258
        %v1260 = vmul.f32 %v1259, %v1208
        %v1261 = vmul.f32 %v1259, %v1209
        %v1262 = vadd.f32 %v1244, %v1260
        %v1263 = vadd.f32 %v1245, %v1261
        %1264 = vrot.lane.b32.xlu0 %v966, 1
        %v1265 = vpop.permute.xlu0 %1264
        %1266 = vrot.lane.b32.xlu0 %v967, 1
        %v1267 = vpop.permute.xlu0 %1266
        %v1268 = vsel %vm309, %v1265, 0.0
        %v1269 = vsel %vm309, %v1267, 0.0
        %1270 = vrot.lane.b32.xlu0 %v966, 127
        %v1271 = vpop.permute.xlu0 %1270
        %1272 = vrot.lane.b32.xlu0 %v967, 127
        %v1273 = vpop.permute.xlu0 %1272
        %v1274 = vsel %vm310, %v1271, 0.0
        %v1275 = vsel %vm310, %v1273, 0.0
        %s1276 = sld [smem:[#allocation9 + $0xc]]
        %v1277 = vstv %s1276
        %v1278 = vmul.f32 %v1277, %v1268
        %v1279 = vmul.f32 %v1277, %v1269
        %v1280 = vadd.f32 %v1250, %v1278
        %v1281 = vadd.f32 %v1251, %v1279
        %s1282 = sld [smem:[#allocation9 + $0x27]]
        %v1283 = vstv %s1282
        %v1284 = vmul.f32 %v1283, %v1268
        %v1285 = vmul.f32 %v1283, %v1269
        %v1286 = vadd.f32 %v1256, %v1284
        %v1287 = vadd.f32 %v1257, %v1285
        %s1288 = sld [smem:[#allocation9 + $0x42]]
        %v1289 = vstv %s1288
        %v1290 = vmul.f32 %v1289, %v1268
        %v1291 = vmul.f32 %v1289, %v1269
        %v1292 = vadd.f32 %v1262, %v1290
        %v1293 = vadd.f32 %v1263, %v1291
        %s1294 = sld [smem:[#allocation9 + $0xd]]
        %v1295 = vstv %s1294
        %v1296 = vmul.f32 %v1295, %v966
        %v1297 = vmul.f32 %v1295, %v967
        %v1298 = vadd.f32 %v1280, %v1296
        %v1299 = vadd.f32 %v1281, %v1297
        %s1300 = sld [smem:[#allocation9 + $0x28]]
        %v1301 = vstv %s1300
        %v1302 = vmul.f32 %v1301, %v966
        %v1303 = vmul.f32 %v1301, %v967
        %v1304 = vadd.f32 %v1286, %v1302
        %v1305 = vadd.f32 %v1287, %v1303
        %s1306 = sld [smem:[#allocation9 + $0x43]]
        %v1307 = vstv %s1306
        %v1308 = vmul.f32 %v1307, %v966
        %v1309 = vmul.f32 %v1307, %v967
        %v1310 = vadd.f32 %v1292, %v1308
        %v1311 = vadd.f32 %v1293, %v1309
        %s1312 = sld [smem:[#allocation9 + $0xe]]
        %v1313 = vstv %s1312
        %v1314 = vmul.f32 %v1313, %v1274
        %v1315 = vmul.f32 %v1313, %v1275
        %v1316 = vadd.f32 %v1298, %v1314
        %v1317 = vadd.f32 %v1299, %v1315
        %s1318 = sld [smem:[#allocation9 + $0x29]]
        %v1319 = vstv %s1318
        %v1320 = vmul.f32 %v1319, %v1274
        %v1321 = vmul.f32 %v1319, %v1275
        %v1322 = vadd.f32 %v1304, %v1320
        %v1323 = vadd.f32 %v1305, %v1321
        %s1324 = sld [smem:[#allocation9 + $0x44]]
        %v1325 = vstv %s1324
        %v1326 = vmul.f32 %v1325, %v1274
        %v1327 = vmul.f32 %v1325, %v1275
        %v1328 = vadd.f32 %v1310, %v1326
        %v1329 = vadd.f32 %v1311, %v1327
        %1330 = vrot.lane.b32.xlu0 %v1196, 1
        %v1331 = vpop.permute.xlu0 %1330
        %1332 = vrot.lane.b32.xlu0 %v1197, 1
        %v1333 = vpop.permute.xlu0 %1332
        %v1334 = vsel %vm309, %v1331, 0.0
        %v1335 = vsel %vm309, %v1333, 0.0
        %1336 = vrot.lane.b32.xlu0 %v1196, 127
        %v1337 = vpop.permute.xlu0 %1336
        %1338 = vrot.lane.b32.xlu0 %v1197, 127
        %v1339 = vpop.permute.xlu0 %1338
        %v1340 = vsel %vm310, %v1337, 0.0
        %v1341 = vsel %vm310, %v1339, 0.0
        %s1342 = sld [smem:[#allocation9 + $0xf]]
        %v1343 = vstv %s1342
        %v1344 = vmul.f32 %v1343, %v1334
        %v1345 = vmul.f32 %v1343, %v1335
        %v1346 = vadd.f32 %v1316, %v1344
        %v1347 = vadd.f32 %v1317, %v1345
        %s1348 = sld [smem:[#allocation9 + $0x2a]]
        %v1349 = vstv %s1348
        %v1350 = vmul.f32 %v1349, %v1334
        %v1351 = vmul.f32 %v1349, %v1335
        %v1352 = vadd.f32 %v1322, %v1350
        %v1353 = vadd.f32 %v1323, %v1351
        %s1354 = sld [smem:[#allocation9 + $0x45]]
        %v1355 = vstv %s1354
        %v1356 = vmul.f32 %v1355, %v1334
        %v1357 = vmul.f32 %v1355, %v1335
        %v1358 = vadd.f32 %v1328, %v1356
        %v1359 = vadd.f32 %v1329, %v1357
        %s1360 = sld [smem:[#allocation9 + $0x10]]
        %v1361 = vstv %s1360
        %v1362 = vmul.f32 %v1361, %v1196
        %v1363 = vmul.f32 %v1361, %v1197
        %v1364 = vadd.f32 %v1346, %v1362
        %v1365 = vadd.f32 %v1347, %v1363
        %s1366 = sld [smem:[#allocation9 + $0x2b]]
        %v1367 = vstv %s1366
        %v1368 = vmul.f32 %v1367, %v1196
        %v1369 = vmul.f32 %v1367, %v1197
        %v1370 = vadd.f32 %v1352, %v1368
        %v1371 = vadd.f32 %v1353, %v1369
        %s1372 = sld [smem:[#allocation9 + $0x46]]
        %v1373 = vstv %s1372
        %v1374 = vmul.f32 %v1373, %v1196
        %v1375 = vmul.f32 %v1373, %v1197
        %v1376 = vadd.f32 %v1358, %v1374
        %v1377 = vadd.f32 %v1359, %v1375
        %s1378 = sld [smem:[#allocation9 + $0x11]]
        %v1379 = vstv %s1378
        %v1380 = vmul.f32 %v1379, %v1340
        %v1381 = vmul.f32 %v1379, %v1341
        %v1382 = vadd.f32 %v1364, %v1380
        %v1383 = vadd.f32 %v1365, %v1381
        %s1384 = sld [smem:[#allocation9 + $0x2c]]
        %v1385 = vstv %s1384
        %v1386 = vmul.f32 %v1385, %v1340
        %v1387 = vmul.f32 %v1385, %v1341
        %v1388 = vadd.f32 %v1370, %v1386
        %v1389 = vadd.f32 %v1371, %v1387
        %s1390 = sld [smem:[#allocation9 + $0x47]]
        %v1391 = vstv %s1390
        %v1392 = vmul.f32 %v1391, %v1340
        %v1393 = vmul.f32 %v1391, %v1341
        %v1394 = vadd.f32 %v1376, %v1392
        %v1395 = vadd.f32 %v1377, %v1393
        %v1396 = vrot.slane %v968, 7
        %v1397 = vrot.slane %v969, 7
        %v1398 = vsel %vm334, %v1396, %v1397
        %v1399 = vsel %vm334, %v1397, %v1396
        %v1400 = vsel %vm314, %v1399, 0.0
        %v1401 = vsel %vm315, %v1398, 0.0
        %v1402 = vrot.slane %v968, 1
        %v1403 = vrot.slane %v969, 1
        %v1404 = vsel %vm341, %v1402, %v1403
        %v1405 = vsel %vm341, %v1403, %v1402
        %v1406 = vsel %vm316, %v1404, 0.0
        %v1407 = vsel %vm317, %v1405, 0.0
        %1408 = vrot.lane.b32.xlu0 %v1400, 1
        %v1409 = vpop.permute.xlu0 %1408
        %1410 = vrot.lane.b32.xlu0 %v1401, 1
        %v1411 = vpop.permute.xlu0 %1410
        %v1412 = vsel %vm309, %v1409, 0.0
        %v1413 = vsel %vm309, %v1411, 0.0
        %1414 = vrot.lane.b32.xlu0 %v1400, 127
        %v1415 = vpop.permute.xlu0 %1414
        %1416 = vrot.lane.b32.xlu0 %v1401, 127
        %v1417 = vpop.permute.xlu0 %1416
        %v1418 = vsel %vm310, %v1415, 0.0
        %v1419 = vsel %vm310, %v1417, 0.0
        %s1420 = sld [smem:[#allocation9 + $0x12]]
        %v1421 = vstv %s1420
        %v1422 = vmul.f32 %v1421, %v1412
        %v1423 = vmul.f32 %v1421, %v1413
        %v1424 = vadd.f32 %v1382, %v1422
        %v1425 = vadd.f32 %v1383, %v1423
        %s1426 = sld [smem:[#allocation9 + $0x2d]]
        %v1427 = vstv %s1426
        %v1428 = vmul.f32 %v1427, %v1412
        %v1429 = vmul.f32 %v1427, %v1413
        %v1430 = vadd.f32 %v1388, %v1428
        %v1431 = vadd.f32 %v1389, %v1429
        %s1432 = sld [smem:[#allocation9 + $0x48]]
        %v1433 = vstv %s1432
        %v1434 = vmul.f32 %v1433, %v1412
        %v1435 = vmul.f32 %v1433, %v1413
        %v1436 = vadd.f32 %v1394, %v1434
        %v1437 = vadd.f32 %v1395, %v1435
        %s1438 = sld [smem:[#allocation9 + $0x13]]
        %v1439 = vstv %s1438
        %v1440 = vmul.f32 %v1439, %v1400
        %v1441 = vmul.f32 %v1439, %v1401
        %v1442 = vadd.f32 %v1424, %v1440
        %v1443 = vadd.f32 %v1425, %v1441
        %s1444 = sld [smem:[#allocation9 + $0x2e]]
        %v1445 = vstv %s1444
        %v1446 = vmul.f32 %v1445, %v1400
        %v1447 = vmul.f32 %v1445, %v1401
        %v1448 = vadd.f32 %v1430, %v1446
        %v1449 = vadd.f32 %v1431, %v1447
        %s1450 = sld [smem:[#allocation9 + $0x49]]
        %v1451 = vstv %s1450
        %v1452 = vmul.f32 %v1451, %v1400
        %v1453 = vmul.f32 %v1451, %v1401
        %v1454 = vadd.f32 %v1436, %v1452
        %v1455 = vadd.f32 %v1437, %v1453
        %s1456 = sld [smem:[#allocation9 + $0x14]]
        %v1457 = vstv %s1456
        %v1458 = vmul.f32 %v1457, %v1418
        %v1459 = vmul.f32 %v1457, %v1419
        %v1460 = vadd.f32 %v1442, %v1458
        %v1461 = vadd.f32 %v1443, %v1459
        %s1462 = sld [smem:[#allocation9 + $0x2f]]
        %v1463 = vstv %s1462
        %v1464 = vmul.f32 %v1463, %v1418
        %v1465 = vmul.f32 %v1463, %v1419
        %v1466 = vadd.f32 %v1448, %v1464
        %v1467 = vadd.f32 %v1449, %v1465
        %s1468 = sld [smem:[#allocation9 + $0x4a]]
        %v1469 = vstv %s1468
        %v1470 = vmul.f32 %v1469, %v1418
        %v1471 = vmul.f32 %v1469, %v1419
        %v1472 = vadd.f32 %v1454, %v1470
        %v1473 = vadd.f32 %v1455, %v1471
        %1474 = vrot.lane.b32.xlu0 %v968, 1
        %v1475 = vpop.permute.xlu0 %1474
        %1476 = vrot.lane.b32.xlu0 %v969, 1
        %v1477 = vpop.permute.xlu0 %1476
        %v1478 = vsel %vm309, %v1475, 0.0
        %v1479 = vsel %vm309, %v1477, 0.0
        %1480 = vrot.lane.b32.xlu0 %v968, 127
        %v1481 = vpop.permute.xlu0 %1480
        %1482 = vrot.lane.b32.xlu0 %v969, 127
        %v1483 = vpop.permute.xlu0 %1482
        %v1484 = vsel %vm310, %v1481, 0.0
        %v1485 = vsel %vm310, %v1483, 0.0
        %s1486 = sld [smem:[#allocation9 + $0x15]]
        %v1487 = vstv %s1486
        %v1488 = vmul.f32 %v1487, %v1478
        %v1489 = vmul.f32 %v1487, %v1479
        %v1490 = vadd.f32 %v1460, %v1488
        %v1491 = vadd.f32 %v1461, %v1489
        %s1492 = sld [smem:[#allocation9 + $0x30]]
        %v1493 = vstv %s1492
        %v1494 = vmul.f32 %v1493, %v1478
        %v1495 = vmul.f32 %v1493, %v1479
        %v1496 = vadd.f32 %v1466, %v1494
        %v1497 = vadd.f32 %v1467, %v1495
        %s1498 = sld [smem:[#allocation9 + $0x4b]]
        %v1499 = vstv %s1498
        %v1500 = vmul.f32 %v1499, %v1478
        %v1501 = vmul.f32 %v1499, %v1479
        %v1502 = vadd.f32 %v1472, %v1500
        %v1503 = vadd.f32 %v1473, %v1501
        %s1504 = sld [smem:[#allocation9 + $0x16]]
        %v1505 = vstv %s1504
        %v1506 = vmul.f32 %v1505, %v968
        %v1507 = vmul.f32 %v1505, %v969
        %v1508 = vadd.f32 %v1490, %v1506
        %v1509 = vadd.f32 %v1491, %v1507
        %s1510 = sld [smem:[#allocation9 + $0x31]]
        %v1511 = vstv %s1510
        %v1512 = vmul.f32 %v1511, %v968
        %v1513 = vmul.f32 %v1511, %v969
        %v1514 = vadd.f32 %v1496, %v1512
        %v1515 = vadd.f32 %v1497, %v1513
        %s1516 = sld [smem:[#allocation9 + $0x4c]]
        %v1517 = vstv %s1516
        %v1518 = vmul.f32 %v1517, %v968
        %v1519 = vmul.f32 %v1517, %v969
        %v1520 = vadd.f32 %v1502, %v1518
        %v1521 = vadd.f32 %v1503, %v1519
        %s1522 = sld [smem:[#allocation9 + $0x17]]
        %v1523 = vstv %s1522
        %v1524 = vmul.f32 %v1523, %v1484
        %v1525 = vmul.f32 %v1523, %v1485
        %v1526 = vadd.f32 %v1508, %v1524
        %v1527 = vadd.f32 %v1509, %v1525
        %s1528 = sld [smem:[#allocation9 + $0x32]]
        %v1529 = vstv %s1528
        %v1530 = vmul.f32 %v1529, %v1484
        %v1531 = vmul.f32 %v1529, %v1485
        %v1532 = vadd.f32 %v1514, %v1530
        %v1533 = vadd.f32 %v1515, %v1531
        %s1534 = sld [smem:[#allocation9 + $0x4d]]
        %v1535 = vstv %s1534
        %v1536 = vmul.f32 %v1535, %v1484
        %v1537 = vmul.f32 %v1535, %v1485
        %v1538 = vadd.f32 %v1520, %v1536
        %v1539 = vadd.f32 %v1521, %v1537
        %1540 = vrot.lane.b32.xlu0 %v1406, 1
        %v1541 = vpop.permute.xlu0 %1540
        %1542 = vrot.lane.b32.xlu0 %v1407, 1
        %v1543 = vpop.permute.xlu0 %1542
        %v1544 = vsel %vm309, %v1541, 0.0
        %v1545 = vsel %vm309, %v1543, 0.0
        %1546 = vrot.lane.b32.xlu0 %v1406, 127
        %v1547 = vpop.permute.xlu0 %1546
        %1548 = vrot.lane.b32.xlu0 %v1407, 127
        %v1549 = vpop.permute.xlu0 %1548
        %v1550 = vsel %vm310, %v1547, 0.0
        %v1551 = vsel %vm310, %v1549, 0.0
        %s1552 = sld [smem:[#allocation9 + $0x18]]
        %v1553 = vstv %s1552
        %v1554 = vmul.f32 %v1553, %v1544
        %v1555 = vmul.f32 %v1553, %v1545
        %v1556 = vadd.f32 %v1526, %v1554
        %v1557 = vadd.f32 %v1527, %v1555
        %s1558 = sld [smem:[#allocation9 + $0x33]]
        %v1559 = vstv %s1558
        %v1560 = vmul.f32 %v1559, %v1544
        %v1561 = vmul.f32 %v1559, %v1545
        %v1562 = vadd.f32 %v1532, %v1560
        %v1563 = vadd.f32 %v1533, %v1561
        %s1564 = sld [smem:[#allocation9 + $0x4e]]
        %v1565 = vstv %s1564
        %v1566 = vmul.f32 %v1565, %v1544
        %v1567 = vmul.f32 %v1565, %v1545
        %v1568 = vadd.f32 %v1538, %v1566
        %v1569 = vadd.f32 %v1539, %v1567
        %s1570 = sld [smem:[#allocation9 + $0x19]]
        %v1571 = vstv %s1570
        %v1572 = vmul.f32 %v1571, %v1406
        %v1573 = vmul.f32 %v1571, %v1407
        %v1574 = vadd.f32 %v1556, %v1572
        %v1575 = vadd.f32 %v1557, %v1573
        %s1576 = sld [smem:[#allocation9 + $0x34]]
        %v1577 = vstv %s1576
        %v1578 = vmul.f32 %v1577, %v1406
        %v1579 = vmul.f32 %v1577, %v1407
        %v1580 = vadd.f32 %v1562, %v1578
        %v1581 = vadd.f32 %v1563, %v1579
        %s1582 = sld [smem:[#allocation9 + $0x4f]]
        %v1583 = vstv %s1582
        %v1584 = vmul.f32 %v1583, %v1406
        %v1585 = vmul.f32 %v1583, %v1407
        %v1586 = vadd.f32 %v1568, %v1584
        %v1587 = vadd.f32 %v1569, %v1585
        %s1588 = sld [smem:[#allocation9 + $0x1a]]
        %v1589 = vstv %s1588
        %v1590 = vmul.f32 %v1589, %v1550
        %v1591 = vmul.f32 %v1589, %v1551
        %v1592 = vadd.f32 %v1574, %v1590
        %v1593 = vadd.f32 %v1575, %v1591
        %s1594 = sld [smem:[#allocation9 + $0x35]]
        %v1595 = vstv %s1594
        %v1596 = vmul.f32 %v1595, %v1550
        %v1597 = vmul.f32 %v1595, %v1551
        %v1598 = vadd.f32 %v1580, %v1596
        %v1599 = vadd.f32 %v1581, %v1597
        %s1600 = sld [smem:[#allocation9 + $0x50]]
        %v1601 = vstv %s1600
        %v1602 = vmul.f32 %v1601, %v1550
        %v1603 = vmul.f32 %v1601, %v1551
        %v1604 = vadd.f32 %v1586, %v1602
        %v1605 = vadd.f32 %v1587, %v1603
        %v1606 = vmax.f32 %v1592, 0.0
        %v1607 = vmax.f32 %v1593, 0.0
        %v1608 = vadd.f32 %v1606, %v318
        %v1609 = vadd.f32 %v1607, %v319
        %1610 = vst [vmem:[%s294] sm:$0xff] %v1608
        %1611 = vst [vmem:[%s294 + $0x8] sm:$0xff] %v1609
        %v1612 = vmax.f32 %v1598, 0.0
        %v1613 = vmax.f32 %v1599, 0.0
        %v1614 = vadd.f32 %v1612, %v321
        %v1615 = vadd.f32 %v1613, %v322
        %s1616 = scalar_lea.vmem %s294, 16 [#allocation12]
        %1617 = vst [vmem:[%s1616] sm:$0xff] %v1614
        %1618 = vst [vmem:[%s1616 + $0x8] sm:$0xff] %v1615
        %v1619 = vmax.f32 %v1604, 0.0
        %v1620 = vmax.f32 %v1605, 0.0
        %v1621 = vadd.f32 %v1619, %v324
        %v1622 = vadd.f32 %v1620, %v325
        %s1623 = scalar_lea.vmem %s294, 32 [#allocation12]
        %1624 = vst [vmem:[%s1623] sm:$0xff] %v1621
        %1625 = vst [vmem:[%s1623 + $0x8] sm:$0xff] %v1622
        %s1626 = sand.u32 %s143, 1
        %s1627 = scalar_lea.sflag [#allocation4], %s1626
        %s1628 = sand.u32 %s143, 1
        %s1629 = smul.addr %s1628, 48
        %s1630 = scalar_lea.vmem [#allocation12], %s1629
        // Predicated region
        $region61: #{tpu_custom_call.1} parent=39 // pred_check
          %p1631 = pneg %p153
        $region62: #{tpu_custom_call.1} parent=39 // pred_check_branch
          %1633 = sbr.rel (%p1631) target = $region64
        $region63: #{tpu_custom_call.1} parent=39 // pred_region
          %s1635 = ssub.s32 768, 768
          %1636 = vsyncadd %s1627, %s1635
          %s1637 = smul.addr %s25, 6
          %s1638 = smul.addr %s1637, 128
          %s1639 = scalar_lea.hbm %s5, %s1638
          %s1640 = sshll.u32 %s1630, 4
          %s1641 = int_to_ptr.vmem [resolvable:$true] %s1640
          %1646 = dma.vmem_to_hbm [thread:$0]  %s1641, 768, %s1639, %s1627, 128, 128, 8
        $region64: #{tpu_custom_call.1} parent=39 // pred_fallthru
          _
      $region40: #{tpu_custom_call.1} parent=5 // pred_fallthru
        _
      %p1647 = scmp.le.s32.totalorder 2, %s20
      // Predicated region
      $region65: #{tpu_custom_call.1} parent=5 // pred_check
        %p1648 = pneg %p1647
      $region66: #{tpu_custom_call.1} parent=5 // pred_check_branch
        %1650 = sbr.rel (%p1648) target = $region68
      $region67: #{tpu_custom_call.1} parent=5 // pred_region
        %s1651 = ssub.s32 %s20, 2
        // Predicated region
        $region69: #{tpu_custom_call.1} parent=67 // pred_check
          %p1652 = pneg %p159
        $region70: #{tpu_custom_call.1} parent=67 // pred_check_branch
          %1654 = sbr.rel (%p1652) target = $region72
        $region71: #{tpu_custom_call.1} parent=67 // pred_region
          %s1655 = sand.u32 %s144, 1
          %s1656 = scalar_lea.sflag [#allocation4], %s1655
          %s1657 = sand.u32 %s144, 1
          %s1658 = smul.addr %s1657, 48
          %s1659 = scalar_lea.vmem [#allocation12], %s1658
          %1660 = dma.done %s1656, 768
        $region72: #{tpu_custom_call.1} parent=67 // pred_fallthru
          _
      $region68: #{tpu_custom_call.1} parent=5 // pred_fallthru
        _
    $region6: #{tpu_custom_call.1} parent=1 // loop_footer
      %s24 = sadd.s32 1, %s20
    $region7: #{tpu_custom_call.1} parent=1 // loop_footer_branch
      %19 = sbr.rel target = $region3
    $region8: #{tpu_custom_call.1} parent=1 // loop_exit
      _
    %1661 = vsyncpa [#allocation3], 1
    %s1662 = scalar_lea.sflag [#allocation3], 1
    %1663 = vsyncpa %s1662, 1
    %1664 = vsyncpa [#allocation4], 1
    %s1665 = scalar_lea.sflag [#allocation4], 1
    %1666 = vsyncpa %s1665, 1
    %1667 = vsyncpa [#allocation5], 1
    %s1668 = scalar_lea.sflag [#allocation5], 1
    %1669 = vsyncpa %s1668, 1
    %1670 = vsyncpa [#allocation8], 1
    %1671 = vsyncpa [#allocation11], 1

</llo_original>
